<compile_context>
chip_gen: v7x
topology: tpu7x:2x2x1
jax: 0.10.0
libtpu: 0.0.40
codegen_flags: <defaults>
</compile_context>

<pallas_src>
import functools
import math

import jax
import jax.numpy as jnp
from jax import lax
from jax.experimental import pallas as pl
from jax.experimental.pallas import tpu as pltpu

MXU_DTYPE = jnp.bfloat16   # MXU-native operands; accumulation stays float32.


# ----------------------------------------------------------------------------
# Pallas kernel: fused bidirectional dilated Conv1d + mean, one (batch, L-tile)
# ----------------------------------------------------------------------------
def _make_bicnn_kernel(*, K, K2, d, P, HB, nl, bi):
    """K taps per direction, K2 virtual taps, dilation d, halo P, aligned halo
    width HB (multiple of 128, >= P), nl L-tiles, bidirectional flag bi."""

    def kernel(*refs):
        if bi:
            xm_ref, xl_ref, xr_ref, w_ref, b_ref, o_ref, xh_ref, col_ref = refs
        else:
            xm_ref, xl_ref, w_ref, b_ref, o_ref, xh_ref, col_ref = refs
            xr_ref = None

        C = o_ref.shape[1]
        Lt = o_ref.shape[2]
        j = pl.program_id(1)

        # ---- bf16 halo tile in VMEM (padding never materialized in HBM) ----
        # Main tile cast ONCE to bf16, stored at a 128-aligned lane offset.
        xh_ref[:, HB:HB + Lt] = xm_ref[0].astype(xh_ref.dtype)

        @pl.when(j == 0)                    # sequence start: zero left halo
        def _():
            xh_ref[:, 0:HB] = jnp.zeros((C, HB), xh_ref.dtype)

        @pl.when(j > 0)                     # interior: tail of previous tile
        def _():
            xh_ref[:, HB - P:HB] = xl_ref[0, :, HB - P:HB].astype(xh_ref.dtype)

        if bi:
            @pl.when(j == nl - 1)           # sequence end: zero right halo
            def _():
                xh_ref[:, HB + Lt:HB + Lt + P] = jnp.zeros((C, P), xh_ref.dtype)

            @pl.when(j < nl - 1)            # interior: head of next tile
            def _():
                xh_ref[:, HB + Lt:HB + Lt + P] = xr_ref[0, :, 0:P].astype(xh_ref.dtype)

        # ---- VMEM-only im2col over the K2 virtual taps (static offsets) ----
        base = HB - P
        for m in range(K2):
            col_ref[m * C:(m + 1) * C, :] = xh_ref[:, base + m * d:base + m * d + Lt]

        # ---- one big MXU matmul (contraction K2*C), f32 accumulate ----------
        acc = jnp.dot(w_ref[...], col_ref[...], preferred_element_type=jnp.float32)
        # bias already holds 0.5*(b1+b2) (or b1); 0.5 is folded into w_ref too.
        o_ref[0] = (acc + b_ref[...]).astype(o_ref.dtype)

    return kernel


# ----------------------------------------------------------------------------
# Wrapper
# ----------------------------------------------------------------------------
def bicnn_forward(x, params, *, kr=25, di=1, bi=True, lt=None):
    """x: (B, C, L) f32. params: PyTorch-layout w1 (C,C,K), b1 (C,), [w2, b2].
    `lt` optionally forces the L-tile size (multiple of the halo width, divides L)."""
    B, C, L = x.shape
    K = kr
    P = (K - 1) * di
    HB = ((P + 127) // 128) * 128            # 128-aligned halo block width

    # ---- pick the L tile (multiple of HB=128; v6e/v7x like >=512, mult of 256)
    if lt is not None and lt % HB == 0 and L % lt == 0:
        Lt = lt
    elif L % HB == 0:
        q = L // HB
        kmax = max(2048 // HB, 1)            # target tiles up to 2048 columns
        best = 1
        for kk in range(1, min(kmax, q) + 1):
            if q % kk == 0:
                best = kk
        Lt = best * HB
    else:
        Lt = L                               # short / odd L: single full-L tile
    nl = L // Lt if (Lt > 0 and L % Lt == 0) else 1
    r = max(Lt // HB, 1)
    nhb = max(-(-L // HB) - 1, 0)            # last valid HB-block index

    # ---- combined tap-stacked lane-dense weight (C, K2*C); 0.5 folded (exact)
    K2 = 2 * K - 1 if bi else K
    Wt = jnp.zeros((K2, C, C), jnp.float32)                       # (tap, Cout, Cin)
    Wt = Wt.at[0:K].add(jnp.transpose(params['w1'].astype(jnp.float32), (2, 0, 1)))
    if bi:
        Wt = Wt.at[K - 1:K2].add(
            jnp.transpose(params['w2'].astype(jnp.float32), (2, 0, 1)))
        Wt = 0.5 * Wt
        bias = 0.5 * (params['b1'] + params['b2'])
    else:
        bias = params['b1']
    Wc = jnp.transpose(Wt, (1, 0, 2)).reshape(C, K2 * C).astype(MXU_DTYPE)
    bias = bias.reshape(C, 1).astype(jnp.float32)

    kern = _make_bicnn_kernel(K=K, K2=K2, d=di, P=P, HB=HB, nl=nl, bi=bi)

    # x is passed multiple times: main tile + small halo blocks (clamped maps).
    x_specs = [
        pl.BlockSpec((1, C, Lt), lambda b, j: (b, 0, j)),
        pl.BlockSpec((1, C, HB), lambda b, j: (b, 0, jnp.maximum(j * r - 1, 0))),
    ]
    x_args = [x, x]
    if bi:
        x_specs.append(
            pl.BlockSpec((1, C, HB), lambda b, j: (b, 0, jnp.minimum((j + 1) * r, nhb))))
        x_args.append(x)

    xh_width = HB + Lt + (P if bi else 0)

    return pl.pallas_call(
        kern,
        out_shape=jax.ShapeDtypeStruct((B, C, L), jnp.float32),
        grid_spec=pltpu.PrefetchScalarGridSpec(
            num_scalar_prefetch=0,
            grid=(B, nl),
            in_specs=x_specs + [
                pl.BlockSpec((C, K2 * C), lambda b, j: (0, 0)),
                pl.BlockSpec((C, 1), lambda b, j: (0, 0)),
            ],
            out_specs=pl.BlockSpec((1, C, Lt), lambda b, j: (b, 0, j)),
            scratch_shapes=[
                pltpu.VMEM((C, xh_width), MXU_DTYPE),      # bf16 halo tile
                pltpu.VMEM((K2 * C, Lt), MXU_DTYPE),       # VMEM-only im2col
            ],
        ),
        compiler_params=pltpu.CompilerParams(
            dimension_semantics=("parallel", "parallel")),
    )(*x_args, Wc, bias)
    # TODO(synk): for L not divisible by 128 the wrapper falls back to a single
    # full-L tile; ragged-tail masking on the L grid axis would lift that.


# ----------------------------------------------------------------------------
# Pure-JAX reference (for the in-script correctness check)
# ----------------------------------------------------------------------------
def bicnn_reference(x, params, *, kr, di, bi):
    P = (kr - 1) * di
    dn = ('NCH', 'OIH', 'NCH')
    xl = jnp.pad(x, ((0, 0), (0, 0), (P, 0)))
    o = lax.conv_general_dilated(xl, params['w1'], (1,), 'VALID',
                                 rhs_dilation=(di,), dimension_numbers=dn)
    o = o + params['b1'][None, :, None]
    if bi:
        xr = jnp.pad(x, ((0, 0), (0, 0), (0, P)))
        o2 = lax.conv_general_dilated(xr, params['w2'], (1,), 'VALID',
                                      rhs_dilation=(di,), dimension_numbers=dn)
        o2 = o2 + params['b2'][None, :, None]
        o = 0.5 * (o + o2)
    return o


# ----------------------------------------------------------------------------
# Main
# ----------------------------------------------------------------------------
if __name__ == "__main__":
    DIMS, DI, KR = 16, 2, 25     # BICNN(dims=16, di=2, kr=25, bi=True)
    B, L = 2, 256

    key = jax.random.PRNGKey(0)
    k1, k2, k3, k4, kx = jax.random.split(key, 5)
    fan_in = DIMS * KR
    bound = 1.0 / math.sqrt(fan_in)   # PyTorch Conv1d default init bounds
    params = {
        'w1': jax.random.uniform(k1, (DIMS, DIMS, KR), jnp.float32, -bound, bound),
        'b1': jax.random.uniform(k2, (DIMS,), jnp.float32, -bound, bound),
        'w2': jax.random.uniform(k3, (DIMS, DIMS, KR), jnp.float32, -bound, bound),
        'b2': jax.random.uniform(k4, (DIMS,), jnp.float32, -bound, bound),
    }
    x = jax.random.normal(kx, (B, DIMS, L), jnp.float32)

    ref = jax.block_until_ready(bicnn_reference(x, params, kr=KR, di=DI, bi=True))

    # lt=128 forces 2 L-tiles (exercises the halo exchange); lt=None = auto pick.
    for lt in (128, None):
        fwd = jax.jit(functools.partial(bicnn_forward, kr=KR, di=DI, bi=True, lt=lt))
        out = jax.block_until_ready(fwd(x, params))
        assert out.shape == (B, DIMS, L), out.shape
        assert bool(jnp.all(jnp.isfinite(out)))
        max_err = float(jnp.max(jnp.abs(out - ref)))
        assert max_err < 5e-2, (lt, max_err)   # bf16 MXU operands, f32 accumulation

    # unidirectional (bi=False) path
    ref1 = jax.block_until_ready(bicnn_reference(x, params, kr=KR, di=DI, bi=False))
    fwd1 = jax.jit(functools.partial(bicnn_forward, kr=KR, di=DI, bi=False, lt=128))
    out1 = jax.block_until_ready(fwd1(x, params))
    assert float(jnp.max(jnp.abs(out1 - ref1))) < 5e-2

    print("KERNEL_OK")
</pallas_src>

<mosaic_0001>
module attributes {stable_mosaic.version = 11 : i64} {
  func.func @kernel(%arg0: i32, %arg1: i32, %arg2: memref<1x16x128xf32, #tpu.memory_space<vmem>>, %arg3: memref<1x16x128xf32, #tpu.memory_space<vmem>>, %arg4: memref<1x16x128xf32, #tpu.memory_space<vmem>>, %arg5: memref<16x784xbf16, #tpu.memory_space<vmem>>, %arg6: memref<16x1xf32, #tpu.memory_space<vmem>>, %arg7: memref<1x16x128xf32, #tpu.memory_space<vmem>>, %arg8: memref<16x304xbf16, #tpu.memory_space<vmem>>, %arg9: memref<784x128xbf16, #tpu.memory_space<vmem>>) attributes {dimension_semantics = [#tpu.dimension_semantics<parallel>, #tpu.dimension_semantics<parallel>], iteration_bounds = array<i64: 2, 2>, scalar_prefetch = 0 : i64, scratch_operands = 2 : i64, tpu.core_type = #tpu.core_type<tc>, window_params = [{transform_indices = @transform_0, window_bounds = array<i64: 1, 16, 128>}, {transform_indices = @transform_1, window_bounds = array<i64: 1, 16, 128>}, {transform_indices = @transform_2, window_bounds = array<i64: 1, 16, 128>}, {pipeline_mode = #tpu.pipeline_mode<synchronous>, transform_indices = @transform_3, window_bounds = array<i64: 16, 784>}, {pipeline_mode = #tpu.pipeline_mode<synchronous>, transform_indices = @transform_4, window_bounds = array<i64: 16, 1>}, {transform_indices = @transform_5, window_bounds = array<i64: 1, 16, 128>}]} {
    %c0 = arith.constant 0 : index
    %c0_0 = arith.constant 0 : index
    %c0_1 = arith.constant 0 : index
    %0 = vector.load %arg2[%c0, %c0_0, %c0_1] : memref<1x16x128xf32, #tpu.memory_space<vmem>>, vector<1x16x128xf32>
    %1 = vector.shape_cast %0 : vector<1x16x128xf32> to vector<16x128xf32>
    %2 = arith.truncf %1 : vector<16x128xf32> to vector<16x128xbf16>
    %c0_2 = arith.constant 0 : index
    %c128 = arith.constant 128 : index
    %3 = vector.load %arg8[%c0_2, %c128] : memref<16x304xbf16, #tpu.memory_space<vmem>>, vector<16x128xbf16>
    tpu.vector_store %arg8[%c0_2, %c128], %2 {strides = array<i32>} : memref<16x304xbf16, #tpu.memory_space<vmem>>, vector<16x128xbf16>,
    %c0_i32 = arith.constant 0 : i32
    %4 = arith.cmpi eq, %arg1, %c0_i32 : i32
    %5 = arith.extui %4 : i1 to i32
    %c0_i32_3 = arith.constant 0 : i32
    %6 = arith.cmpi ne, %5, %c0_i32_3 : i32
    scf.if %6 {
      %cst_125 = arith.constant 0.000000e+00 : bf16
      %123 = vector.broadcast %cst_125 : bf16 to vector<16x128xbf16>
      %c0_126 = arith.constant 0 : index
      %c0_127 = arith.constant 0 : index
      %124 = vector.load %arg8[%c0_126, %c0_127] : memref<16x304xbf16, #tpu.memory_space<vmem>>, vector<16x128xbf16>
      tpu.vector_store %arg8[%c0_126, %c0_127], %123 {strides = array<i32>} : memref<16x304xbf16, #tpu.memory_space<vmem>>, vector<16x128xbf16>,
    } else {
    }
    %c0_i32_4 = arith.constant 0 : i32
    %7 = arith.cmpi sgt, %arg1, %c0_i32_4 : i32
    %8 = arith.extui %7 : i1 to i32
    %c0_i32_5 = arith.constant 0 : i32
    %9 = arith.cmpi ne, %8, %c0_i32_5 : i32
    scf.if %9 {
      %c0_125 = arith.constant 0 : index
      %c0_126 = arith.constant 0 : index
      %c80_127 = arith.constant 80 : index
      %123 = vector.load %arg3[%c0_125, %c0_126, %c80_127] : memref<1x16x128xf32, #tpu.memory_space<vmem>>, vector<1x16x48xf32>
      %124 = vector.shape_cast %123 : vector<1x16x48xf32> to vector<16x48xf32>
      %125 = arith.truncf %124 : vector<16x48xf32> to vector<16x48xbf16>
      %c0_128 = arith.constant 0 : index
      %c80_129 = arith.constant 80 : index
      %126 = vector.load %arg8[%c0_128, %c80_129] : memref<16x304xbf16, #tpu.memory_space<vmem>>, vector<16x48xbf16>
      tpu.vector_store %arg8[%c0_128, %c80_129], %125 {strides = array<i32>} : memref<16x304xbf16, #tpu.memory_space<vmem>>, vector<16x48xbf16>,
    } else {
    }
    %c1_i32 = arith.constant 1 : i32
    %10 = arith.cmpi eq, %arg1, %c1_i32 : i32
    %11 = arith.extui %10 : i1 to i32
    %c0_i32_6 = arith.constant 0 : i32
    %12 = arith.cmpi ne, %11, %c0_i32_6 : i32
    scf.if %12 {
      %cst_125 = arith.constant 0.000000e+00 : bf16
      %123 = vector.broadcast %cst_125 : bf16 to vector<16x48xbf16>
      %c0_126 = arith.constant 0 : index
      %c256_127 = arith.constant 256 : index
      %124 = vector.load %arg8[%c0_126, %c256_127] : memref<16x304xbf16, #tpu.memory_space<vmem>>, vector<16x48xbf16>
      tpu.vector_store %arg8[%c0_126, %c256_127], %123 {strides = array<i32>} : memref<16x304xbf16, #tpu.memory_space<vmem>>, vector<16x48xbf16>,
    } else {
    }
    %c1_i32_7 = arith.constant 1 : i32
    %13 = arith.cmpi slt, %arg1, %c1_i32_7 : i32
    %14 = arith.extui %13 : i1 to i32
    %c0_i32_8 = arith.constant 0 : i32
    %15 = arith.cmpi ne, %14, %c0_i32_8 : i32
    scf.if %15 {
      %c0_125 = arith.constant 0 : index
      %c0_126 = arith.constant 0 : index
      %c0_127 = arith.constant 0 : index
      %123 = vector.load %arg4[%c0_125, %c0_126, %c0_127] : memref<1x16x128xf32, #tpu.memory_space<vmem>>, vector<1x16x48xf32>
      %124 = vector.shape_cast %123 : vector<1x16x48xf32> to vector<16x48xf32>
      %125 = arith.truncf %124 : vector<16x48xf32> to vector<16x48xbf16>
      %c0_128 = arith.constant 0 : index
      %c256_129 = arith.constant 256 : index
      %126 = vector.load %arg8[%c0_128, %c256_129] : memref<16x304xbf16, #tpu.memory_space<vmem>>, vector<16x48xbf16>
      tpu.vector_store %arg8[%c0_128, %c256_129], %125 {strides = array<i32>} : memref<16x304xbf16, #tpu.memory_space<vmem>>, vector<16x48xbf16>,
    } else {
    }
    %c0_9 = arith.constant 0 : index
    %c80 = arith.constant 80 : index
    %16 = vector.load %arg8[%c0_9, %c80] : memref<16x304xbf16, #tpu.memory_space<vmem>>, vector<16x128xbf16>
    %c0_10 = arith.constant 0 : index
    %c0_11 = arith.constant 0 : index
    %17 = vector.load %arg9[%c0_10, %c0_11] : memref<784x128xbf16, #tpu.memory_space<vmem>>, vector<16x128xbf16>
    tpu.vector_store %arg9[%c0_10, %c0_11], %16 {strides = array<i32>} : memref<784x128xbf16, #tpu.memory_space<vmem>>, vector<16x128xbf16>,
    %c0_12 = arith.constant 0 : index
    %c82 = arith.constant 82 : index
    %18 = vector.load %arg8[%c0_12, %c82] : memref<16x304xbf16, #tpu.memory_space<vmem>>, vector<16x128xbf16>
    %c16 = arith.constant 16 : index
    %c0_13 = arith.constant 0 : index
    %19 = vector.load %arg9[%c16, %c0_13] : memref<784x128xbf16, #tpu.memory_space<vmem>>, vector<16x128xbf16>
    tpu.vector_store %arg9[%c16, %c0_13], %18 {strides = array<i32>} : memref<784x128xbf16, #tpu.memory_space<vmem>>, vector<16x128xbf16>,
    %c0_14 = arith.constant 0 : index
    %c84 = arith.constant 84 : index
    %20 = vector.load %arg8[%c0_14, %c84] : memref<16x304xbf16, #tpu.memory_space<vmem>>, vector<16x128xbf16>
    %c32 = arith.constant 32 : index
    %c0_15 = arith.constant 0 : index
    %21 = vector.load %arg9[%c32, %c0_15] : memref<784x128xbf16, #tpu.memory_space<vmem>>, vector<16x128xbf16>
    tpu.vector_store %arg9[%c32, %c0_15], %20 {strides = array<i32>} : memref<784x128xbf16, #tpu.memory_space<vmem>>, vector<16x128xbf16>,
    %c0_16 = arith.constant 0 : index
    %c86 = arith.constant 86 : index
    %22 = vector.load %arg8[%c0_16, %c86] : memref<16x304xbf16, #tpu.memory_space<vmem>>, vector<16x128xbf16>
    %c48 = arith.constant 48 : index
    %c0_17 = arith.constant 0 : index
    %23 = vector.load %arg9[%c48, %c0_17] : memref<784x128xbf16, #tpu.memory_space<vmem>>, vector<16x128xbf16>
    tpu.vector_store %arg9[%c48, %c0_17], %22 {strides = array<i32>} : memref<784x128xbf16, #tpu.memory_space<vmem>>, vector<16x128xbf16>,
    %c0_18 = arith.constant 0 : index
    %c88 = arith.constant 88 : index
    %24 = vector.load %arg8[%c0_18, %c88] : memref<16x304xbf16, #tpu.memory_space<vmem>>, vector<16x128xbf16>
    %c64 = arith.constant 64 : index
    %c0_19 = arith.constant 0 : index
    %25 = vector.load %arg9[%c64, %c0_19] : memref<784x128xbf16, #tpu.memory_space<vmem>>, vector<16x128xbf16>
    tpu.vector_store %arg9[%c64, %c0_19], %24 {strides = array<i32>} : memref<784x128xbf16, #tpu.memory_space<vmem>>, vector<16x128xbf16>,
    %c0_20 = arith.constant 0 : index
    %c90 = arith.constant 90 : index
    %26 = vector.load %arg8[%c0_20, %c90] : memref<16x304xbf16, #tpu.memory_space<vmem>>, vector<16x128xbf16>
    %c80_21 = arith.constant 80 : index
    %c0_22 = arith.constant 0 : index
    %27 = vector.load %arg9[%c80_21, %c0_22] : memref<784x128xbf16, #tpu.memory_space<vmem>>, vector<16x128xbf16>
    tpu.vector_store %arg9[%c80_21, %c0_22], %26 {strides = array<i32>} : memref<784x128xbf16, #tpu.memory_space<vmem>>, vector<16x128xbf16>,
    %c0_23 = arith.constant 0 : index
    %c92 = arith.constant 92 : index
    %28 = vector.load %arg8[%c0_23, %c92] : memref<16x304xbf16, #tpu.memory_space<vmem>>, vector<16x128xbf16>
    %c96 = arith.constant 96 : index
    %c0_24 = arith.constant 0 : index
    %29 = vector.load %arg9[%c96, %c0_24] : memref<784x128xbf16, #tpu.memory_space<vmem>>, vector<16x128xbf16>
    tpu.vector_store %arg9[%c96, %c0_24], %28 {strides = array<i32>} : memref<784x128xbf16, #tpu.memory_space<vmem>>, vector<16x128xbf16>,
    %c0_25 = arith.constant 0 : index
    %c94 = arith.constant 94 : index
    %30 = vector.load %arg8[%c0_25, %c94] : memref<16x304xbf16, #tpu.memory_space<vmem>>, vector<16x128xbf16>
    %c112 = arith.constant 112 : index
    %c0_26 = arith.constant 0 : index
    %31 = vector.load %arg9[%c112, %c0_26] : memref<784x128xbf16, #tpu.memory_space<vmem>>, vector<16x128xbf16>
    tpu.vector_store %arg9[%c112, %c0_26], %30 {strides = array<i32>} : memref<784x128xbf16, #tpu.memory_space<vmem>>, vector<16x128xbf16>,
    %c0_27 = arith.constant 0 : index
    %c96_28 = arith.constant 96 : index
    %32 = vector.load %arg8[%c0_27, %c96_28] : memref<16x304xbf16, #tpu.memory_space<vmem>>, vector<16x128xbf16>
    %c128_29 = arith.constant 128 : index
    %c0_30 = arith.constant 0 : index
    %33 = vector.load %arg9[%c128_29, %c0_30] : memref<784x128xbf16, #tpu.memory_space<vmem>>, vector<16x128xbf16>
    tpu.vector_store %arg9[%c128_29, %c0_30], %32 {strides = array<i32>} : memref<784x128xbf16, #tpu.memory_space<vmem>>, vector<16x128xbf16>,
    %c0_31 = arith.constant 0 : index
    %c98 = arith.constant 98 : index
    %34 = vector.load %arg8[%c0_31, %c98] : memref<16x304xbf16, #tpu.memory_space<vmem>>, vector<16x128xbf16>
    %c144 = arith.constant 144 : index
    %c0_32 = arith.constant 0 : index
    %35 = vector.load %arg9[%c144, %c0_32] : memref<784x128xbf16, #tpu.memory_space<vmem>>, vector<16x128xbf16>
    tpu.vector_store %arg9[%c144, %c0_32], %34 {strides = array<i32>} : memref<784x128xbf16, #tpu.memory_space<vmem>>, vector<16x128xbf16>,
    %c0_33 = arith.constant 0 : index
    %c100 = arith.constant 100 : index
    %36 = vector.load %arg8[%c0_33, %c100] : memref<16x304xbf16, #tpu.memory_space<vmem>>, vector<16x128xbf16>
    %c160 = arith.constant 160 : index
    %c0_34 = arith.constant 0 : index
    %37 = vector.load %arg9[%c160, %c0_34] : memref<784x128xbf16, #tpu.memory_space<vmem>>, vector<16x128xbf16>
    tpu.vector_store %arg9[%c160, %c0_34], %36 {strides = array<i32>} : memref<784x128xbf16, #tpu.memory_space<vmem>>, vector<16x128xbf16>,
    %c0_35 = arith.constant 0 : index
    %c102 = arith.constant 102 : index
    %38 = vector.load %arg8[%c0_35, %c102] : memref<16x304xbf16, #tpu.memory_space<vmem>>, vector<16x128xbf16>
    %c176 = arith.constant 176 : index
    %c0_36 = arith.constant 0 : index
    %39 = vector.load %arg9[%c176, %c0_36] : memref<784x128xbf16, #tpu.memory_space<vmem>>, vector<16x128xbf16>
    tpu.vector_store %arg9[%c176, %c0_36], %38 {strides = array<i32>} : memref<784x128xbf16, #tpu.memory_space<vmem>>, vector<16x128xbf16>,
    %c0_37 = arith.constant 0 : index
    %c104 = arith.constant 104 : index
    %40 = vector.load %arg8[%c0_37, %c104] : memref<16x304xbf16, #tpu.memory_space<vmem>>, vector<16x128xbf16>
    %c192 = arith.constant 192 : index
    %c0_38 = arith.constant 0 : index
    %41 = vector.load %arg9[%c192, %c0_38] : memref<784x128xbf16, #tpu.memory_space<vmem>>, vector<16x128xbf16>
    tpu.vector_store %arg9[%c192, %c0_38], %40 {strides = array<i32>} : memref<784x128xbf16, #tpu.memory_space<vmem>>, vector<16x128xbf16>,
    %c0_39 = arith.constant 0 : index
    %c106 = arith.constant 106 : index
    %42 = vector.load %arg8[%c0_39, %c106] : memref<16x304xbf16, #tpu.memory_space<vmem>>, vector<16x128xbf16>
    %c208 = arith.constant 208 : index
    %c0_40 = arith.constant 0 : index
    %43 = vector.load %arg9[%c208, %c0_40] : memref<784x128xbf16, #tpu.memory_space<vmem>>, vector<16x128xbf16>
    tpu.vector_store %arg9[%c208, %c0_40], %42 {strides = array<i32>} : memref<784x128xbf16, #tpu.memory_space<vmem>>, vector<16x128xbf16>,
    %c0_41 = arith.constant 0 : index
    %c108 = arith.constant 108 : index
    %44 = vector.load %arg8[%c0_41, %c108] : memref<16x304xbf16, #tpu.memory_space<vmem>>, vector<16x128xbf16>
    %c224 = arith.constant 224 : index
    %c0_42 = arith.constant 0 : index
    %45 = vector.load %arg9[%c224, %c0_42] : memref<784x128xbf16, #tpu.memory_space<vmem>>, vector<16x128xbf16>
    tpu.vector_store %arg9[%c224, %c0_42], %44 {strides = array<i32>} : memref<784x128xbf16, #tpu.memory_space<vmem>>, vector<16x128xbf16>,
    %c0_43 = arith.constant 0 : index
    %c110 = arith.constant 110 : index
    %46 = vector.load %arg8[%c0_43, %c110] : memref<16x304xbf16, #tpu.memory_space<vmem>>, vector<16x128xbf16>
    %c240 = arith.constant 240 : index
    %c0_44 = arith.constant 0 : index
    %47 = vector.load %arg9[%c240, %c0_44] : memref<784x128xbf16, #tpu.memory_space<vmem>>, vector<16x128xbf16>
    tpu.vector_store %arg9[%c240, %c0_44], %46 {strides = array<i32>} : memref<784x128xbf16, #tpu.memory_space<vmem>>, vector<16x128xbf16>,
    %c0_45 = arith.constant 0 : index
    %c112_46 = arith.constant 112 : index
    %48 = vector.load %arg8[%c0_45, %c112_46] : memref<16x304xbf16, #tpu.memory_space<vmem>>, vector<16x128xbf16>
    %c256 = arith.constant 256 : index
    %c0_47 = arith.constant 0 : index
    %49 = vector.load %arg9[%c256, %c0_47] : memref<784x128xbf16, #tpu.memory_space<vmem>>, vector<16x128xbf16>
    tpu.vector_store %arg9[%c256, %c0_47], %48 {strides = array<i32>} : memref<784x128xbf16, #tpu.memory_space<vmem>>, vector<16x128xbf16>,
    %c0_48 = arith.constant 0 : index
    %c114 = arith.constant 114 : index
    %50 = vector.load %arg8[%c0_48, %c114] : memref<16x304xbf16, #tpu.memory_space<vmem>>, vector<16x128xbf16>
    %c272 = arith.constant 272 : index
    %c0_49 = arith.constant 0 : index
    %51 = vector.load %arg9[%c272, %c0_49] : memref<784x128xbf16, #tpu.memory_space<vmem>>, vector<16x128xbf16>
    tpu.vector_store %arg9[%c272, %c0_49], %50 {strides = array<i32>} : memref<784x128xbf16, #tpu.memory_space<vmem>>, vector<16x128xbf16>,
    %c0_50 = arith.constant 0 : index
    %c116 = arith.constant 116 : index
    %52 = vector.load %arg8[%c0_50, %c116] : memref<16x304xbf16, #tpu.memory_space<vmem>>, vector<16x128xbf16>
    %c288 = arith.constant 288 : index
    %c0_51 = arith.constant 0 : index
    %53 = vector.load %arg9[%c288, %c0_51] : memref<784x128xbf16, #tpu.memory_space<vmem>>, vector<16x128xbf16>
    tpu.vector_store %arg9[%c288, %c0_51], %52 {strides = array<i32>} : memref<784x128xbf16, #tpu.memory_space<vmem>>, vector<16x128xbf16>,
    %c0_52 = arith.constant 0 : index
    %c118 = arith.constant 118 : index
    %54 = vector.load %arg8[%c0_52, %c118] : memref<16x304xbf16, #tpu.memory_space<vmem>>, vector<16x128xbf16>
    %c304 = arith.constant 304 : index
    %c0_53 = arith.constant 0 : index
    %55 = vector.load %arg9[%c304, %c0_53] : memref<784x128xbf16, #tpu.memory_space<vmem>>, vector<16x128xbf16>
    tpu.vector_store %arg9[%c304, %c0_53], %54 {strides = array<i32>} : memref<784x128xbf16, #tpu.memory_space<vmem>>, vector<16x128xbf16>,
    %c0_54 = arith.constant 0 : index
    %c120 = arith.constant 120 : index
    %56 = vector.load %arg8[%c0_54, %c120] : memref<16x304xbf16, #tpu.memory_space<vmem>>, vector<16x128xbf16>
    %c320 = arith.constant 320 : index
    %c0_55 = arith.constant 0 : index
    %57 = vector.load %arg9[%c320, %c0_55] : memref<784x128xbf16, #tpu.memory_space<vmem>>, vector<16x128xbf16>
    tpu.vector_store %arg9[%c320, %c0_55], %56 {strides = array<i32>} : memref<784x128xbf16, #tpu.memory_space<vmem>>, vector<16x128xbf16>,
    %c0_56 = arith.constant 0 : index
    %c122 = arith.constant 122 : index
    %58 = vector.load %arg8[%c0_56, %c122] : memref<16x304xbf16, #tpu.memory_space<vmem>>, vector<16x128xbf16>
    %c336 = arith.constant 336 : index
    %c0_57 = arith.constant 0 : index
    %59 = vector.load %arg9[%c336, %c0_57] : memref<784x128xbf16, #tpu.memory_space<vmem>>, vector<16x128xbf16>
    tpu.vector_store %arg9[%c336, %c0_57], %58 {strides = array<i32>} : memref<784x128xbf16, #tpu.memory_space<vmem>>, vector<16x128xbf16>,
    %c0_58 = arith.constant 0 : index
    %c124 = arith.constant 124 : index
    %60 = vector.load %arg8[%c0_58, %c124] : memref<16x304xbf16, #tpu.memory_space<vmem>>, vector<16x128xbf16>
    %c352 = arith.constant 352 : index
    %c0_59 = arith.constant 0 : index
    %61 = vector.load %arg9[%c352, %c0_59] : memref<784x128xbf16, #tpu.memory_space<vmem>>, vector<16x128xbf16>
    tpu.vector_store %arg9[%c352, %c0_59], %60 {strides = array<i32>} : memref<784x128xbf16, #tpu.memory_space<vmem>>, vector<16x128xbf16>,
    %c0_60 = arith.constant 0 : index
    %c126 = arith.constant 126 : index
    %62 = vector.load %arg8[%c0_60, %c126] : memref<16x304xbf16, #tpu.memory_space<vmem>>, vector<16x128xbf16>
    %c368 = arith.constant 368 : index
    %c0_61 = arith.constant 0 : index
    %63 = vector.load %arg9[%c368, %c0_61] : memref<784x128xbf16, #tpu.memory_space<vmem>>, vector<16x128xbf16>
    tpu.vector_store %arg9[%c368, %c0_61], %62 {strides = array<i32>} : memref<784x128xbf16, #tpu.memory_space<vmem>>, vector<16x128xbf16>,
    %c0_62 = arith.constant 0 : index
    %c128_63 = arith.constant 128 : index
    %64 = vector.load %arg8[%c0_62, %c128_63] : memref<16x304xbf16, #tpu.memory_space<vmem>>, vector<16x128xbf16>
    %c384 = arith.constant 384 : index
    %c0_64 = arith.constant 0 : index
    %65 = vector.load %arg9[%c384, %c0_64] : memref<784x128xbf16, #tpu.memory_space<vmem>>, vector<16x128xbf16>
    tpu.vector_store %arg9[%c384, %c0_64], %64 {strides = array<i32>} : memref<784x128xbf16, #tpu.memory_space<vmem>>, vector<16x128xbf16>,
    %c0_65 = arith.constant 0 : index
    %c130 = arith.constant 130 : index
    %66 = vector.load %arg8[%c0_65, %c130] : memref<16x304xbf16, #tpu.memory_space<vmem>>, vector<16x128xbf16>
    %c400 = arith.constant 400 : index
    %c0_66 = arith.constant 0 : index
    %67 = vector.load %arg9[%c400, %c0_66] : memref<784x128xbf16, #tpu.memory_space<vmem>>, vector<16x128xbf16>
    tpu.vector_store %arg9[%c400, %c0_66], %66 {strides = array<i32>} : memref<784x128xbf16, #tpu.memory_space<vmem>>, vector<16x128xbf16>,
    %c0_67 = arith.constant 0 : index
    %c132 = arith.constant 132 : index
    %68 = vector.load %arg8[%c0_67, %c132] : memref<16x304xbf16, #tpu.memory_space<vmem>>, vector<16x128xbf16>
    %c416 = arith.constant 416 : index
    %c0_68 = arith.constant 0 : index
    %69 = vector.load %arg9[%c416, %c0_68] : memref<784x128xbf16, #tpu.memory_space<vmem>>, vector<16x128xbf16>
    tpu.vector_store %arg9[%c416, %c0_68], %68 {strides = array<i32>} : memref<784x128xbf16, #tpu.memory_space<vmem>>, vector<16x128xbf16>,
    %c0_69 = arith.constant 0 : index
    %c134 = arith.constant 134 : index
    %70 = vector.load %arg8[%c0_69, %c134] : memref<16x304xbf16, #tpu.memory_space<vmem>>, vector<16x128xbf16>
    %c432 = arith.constant 432 : index
    %c0_70 = arith.constant 0 : index
    %71 = vector.load %arg9[%c432, %c0_70] : memref<784x128xbf16, #tpu.memory_space<vmem>>, vector<16x128xbf16>
    tpu.vector_store %arg9[%c432, %c0_70], %70 {strides = array<i32>} : memref<784x128xbf16, #tpu.memory_space<vmem>>, vector<16x128xbf16>,
    %c0_71 = arith.constant 0 : index
    %c136 = arith.constant 136 : index
    %72 = vector.load %arg8[%c0_71, %c136] : memref<16x304xbf16, #tpu.memory_space<vmem>>, vector<16x128xbf16>
    %c448 = arith.constant 448 : index
    %c0_72 = arith.constant 0 : index
    %73 = vector.load %arg9[%c448, %c0_72] : memref<784x128xbf16, #tpu.memory_space<vmem>>, vector<16x128xbf16>
    tpu.vector_store %arg9[%c448, %c0_72], %72 {strides = array<i32>} : memref<784x128xbf16, #tpu.memory_space<vmem>>, vector<16x128xbf16>,
    %c0_73 = arith.constant 0 : index
    %c138 = arith.constant 138 : index
    %74 = vector.load %arg8[%c0_73, %c138] : memref<16x304xbf16, #tpu.memory_space<vmem>>, vector<16x128xbf16>
    %c464 = arith.constant 464 : index
    %c0_74 = arith.constant 0 : index
    %75 = vector.load %arg9[%c464, %c0_74] : memref<784x128xbf16, #tpu.memory_space<vmem>>, vector<16x128xbf16>
    tpu.vector_store %arg9[%c464, %c0_74], %74 {strides = array<i32>} : memref<784x128xbf16, #tpu.memory_space<vmem>>, vector<16x128xbf16>,
    %c0_75 = arith.constant 0 : index
    %c140 = arith.constant 140 : index
    %76 = vector.load %arg8[%c0_75, %c140] : memref<16x304xbf16, #tpu.memory_space<vmem>>, vector<16x128xbf16>
    %c480 = arith.constant 480 : index
    %c0_76 = arith.constant 0 : index
    %77 = vector.load %arg9[%c480, %c0_76] : memref<784x128xbf16, #tpu.memory_space<vmem>>, vector<16x128xbf16>
    tpu.vector_store %arg9[%c480, %c0_76], %76 {strides = array<i32>} : memref<784x128xbf16, #tpu.memory_space<vmem>>, vector<16x128xbf16>,
    %c0_77 = arith.constant 0 : index
    %c142 = arith.constant 142 : index
    %78 = vector.load %arg8[%c0_77, %c142] : memref<16x304xbf16, #tpu.memory_space<vmem>>, vector<16x128xbf16>
    %c496 = arith.constant 496 : index
    %c0_78 = arith.constant 0 : index
    %79 = vector.load %arg9[%c496, %c0_78] : memref<784x128xbf16, #tpu.memory_space<vmem>>, vector<16x128xbf16>
    tpu.vector_store %arg9[%c496, %c0_78], %78 {strides = array<i32>} : memref<784x128xbf16, #tpu.memory_space<vmem>>, vector<16x128xbf16>,
    %c0_79 = arith.constant 0 : index
    %c144_80 = arith.constant 144 : index
    %80 = vector.load %arg8[%c0_79, %c144_80] : memref<16x304xbf16, #tpu.memory_space<vmem>>, vector<16x128xbf16>
    %c512 = arith.constant 512 : index
    %c0_81 = arith.constant 0 : index
    %81 = vector.load %arg9[%c512, %c0_81] : memref<784x128xbf16, #tpu.memory_space<vmem>>, vector<16x128xbf16>
    tpu.vector_store %arg9[%c512, %c0_81], %80 {strides = array<i32>} : memref<784x128xbf16, #tpu.memory_space<vmem>>, vector<16x128xbf16>,
    %c0_82 = arith.constant 0 : index
    %c146 = arith.constant 146 : index
    %82 = vector.load %arg8[%c0_82, %c146] : memref<16x304xbf16, #tpu.memory_space<vmem>>, vector<16x128xbf16>
    %c528 = arith.constant 528 : index
    %c0_83 = arith.constant 0 : index
    %83 = vector.load %arg9[%c528, %c0_83] : memref<784x128xbf16, #tpu.memory_space<vmem>>, vector<16x128xbf16>
    tpu.vector_store %arg9[%c528, %c0_83], %82 {strides = array<i32>} : memref<784x128xbf16, #tpu.memory_space<vmem>>, vector<16x128xbf16>,
    %c0_84 = arith.constant 0 : index
    %c148 = arith.constant 148 : index
    %84 = vector.load %arg8[%c0_84, %c148] : memref<16x304xbf16, #tpu.memory_space<vmem>>, vector<16x128xbf16>
    %c544 = arith.constant 544 : index
    %c0_85 = arith.constant 0 : index
    %85 = vector.load %arg9[%c544, %c0_85] : memref<784x128xbf16, #tpu.memory_space<vmem>>, vector<16x128xbf16>
    tpu.vector_store %arg9[%c544, %c0_85], %84 {strides = array<i32>} : memref<784x128xbf16, #tpu.memory_space<vmem>>, vector<16x128xbf16>,
    %c0_86 = arith.constant 0 : index
    %c150 = arith.constant 150 : index
    %86 = vector.load %arg8[%c0_86, %c150] : memref<16x304xbf16, #tpu.memory_space<vmem>>, vector<16x128xbf16>
    %c560 = arith.constant 560 : index
    %c0_87 = arith.constant 0 : index
    %87 = vector.load %arg9[%c560, %c0_87] : memref<784x128xbf16, #tpu.memory_space<vmem>>, vector<16x128xbf16>
    tpu.vector_store %arg9[%c560, %c0_87], %86 {strides = array<i32>} : memref<784x128xbf16, #tpu.memory_space<vmem>>, vector<16x128xbf16>,
    %c0_88 = arith.constant 0 : index
    %c152 = arith.constant 152 : index
    %88 = vector.load %arg8[%c0_88, %c152] : memref<16x304xbf16, #tpu.memory_space<vmem>>, vector<16x128xbf16>
    %c576 = arith.constant 576 : index
    %c0_89 = arith.constant 0 : index
    %89 = vector.load %arg9[%c576, %c0_89] : memref<784x128xbf16, #tpu.memory_space<vmem>>, vector<16x128xbf16>
    tpu.vector_store %arg9[%c576, %c0_89], %88 {strides = array<i32>} : memref<784x128xbf16, #tpu.memory_space<vmem>>, vector<16x128xbf16>,
    %c0_90 = arith.constant 0 : index
    %c154 = arith.constant 154 : index
    %90 = vector.load %arg8[%c0_90, %c154] : memref<16x304xbf16, #tpu.memory_space<vmem>>, vector<16x128xbf16>
    %c592 = arith.constant 592 : index
    %c0_91 = arith.constant 0 : index
    %91 = vector.load %arg9[%c592, %c0_91] : memref<784x128xbf16, #tpu.memory_space<vmem>>, vector<16x128xbf16>
    tpu.vector_store %arg9[%c592, %c0_91], %90 {strides = array<i32>} : memref<784x128xbf16, #tpu.memory_space<vmem>>, vector<16x128xbf16>,
    %c0_92 = arith.constant 0 : index
    %c156 = arith.constant 156 : index
    %92 = vector.load %arg8[%c0_92, %c156] : memref<16x304xbf16, #tpu.memory_space<vmem>>, vector<16x128xbf16>
    %c608 = arith.constant 608 : index
    %c0_93 = arith.constant 0 : index
    %93 = vector.load %arg9[%c608, %c0_93] : memref<784x128xbf16, #tpu.memory_space<vmem>>, vector<16x128xbf16>
    tpu.vector_store %arg9[%c608, %c0_93], %92 {strides = array<i32>} : memref<784x128xbf16, #tpu.memory_space<vmem>>, vector<16x128xbf16>,
    %c0_94 = arith.constant 0 : index
    %c158 = arith.constant 158 : index
    %94 = vector.load %arg8[%c0_94, %c158] : memref<16x304xbf16, #tpu.memory_space<vmem>>, vector<16x128xbf16>
    %c624 = arith.constant 624 : index
    %c0_95 = arith.constant 0 : index
    %95 = vector.load %arg9[%c624, %c0_95] : memref<784x128xbf16, #tpu.memory_space<vmem>>, vector<16x128xbf16>
    tpu.vector_store %arg9[%c624, %c0_95], %94 {strides = array<i32>} : memref<784x128xbf16, #tpu.memory_space<vmem>>, vector<16x128xbf16>,
    %c0_96 = arith.constant 0 : index
    %c160_97 = arith.constant 160 : index
    %96 = vector.load %arg8[%c0_96, %c160_97] : memref<16x304xbf16, #tpu.memory_space<vmem>>, vector<16x128xbf16>
    %c640 = arith.constant 640 : index
    %c0_98 = arith.constant 0 : index
    %97 = vector.load %arg9[%c640, %c0_98] : memref<784x128xbf16, #tpu.memory_space<vmem>>, vector<16x128xbf16>
    tpu.vector_store %arg9[%c640, %c0_98], %96 {strides = array<i32>} : memref<784x128xbf16, #tpu.memory_space<vmem>>, vector<16x128xbf16>,
    %c0_99 = arith.constant 0 : index
    %c162 = arith.constant 162 : index
    %98 = vector.load %arg8[%c0_99, %c162] : memref<16x304xbf16, #tpu.memory_space<vmem>>, vector<16x128xbf16>
    %c656 = arith.constant 656 : index
    %c0_100 = arith.constant 0 : index
    %99 = vector.load %arg9[%c656, %c0_100] : memref<784x128xbf16, #tpu.memory_space<vmem>>, vector<16x128xbf16>
    tpu.vector_store %arg9[%c656, %c0_100], %98 {strides = array<i32>} : memref<784x128xbf16, #tpu.memory_space<vmem>>, vector<16x128xbf16>,
    %c0_101 = arith.constant 0 : index
    %c164 = arith.constant 164 : index
    %100 = vector.load %arg8[%c0_101, %c164] : memref<16x304xbf16, #tpu.memory_space<vmem>>, vector<16x128xbf16>
    %c672 = arith.constant 672 : index
    %c0_102 = arith.constant 0 : index
    %101 = vector.load %arg9[%c672, %c0_102] : memref<784x128xbf16, #tpu.memory_space<vmem>>, vector<16x128xbf16>
    tpu.vector_store %arg9[%c672, %c0_102], %100 {strides = array<i32>} : memref<784x128xbf16, #tpu.memory_space<vmem>>, vector<16x128xbf16>,
    %c0_103 = arith.constant 0 : index
    %c166 = arith.constant 166 : index
    %102 = vector.load %arg8[%c0_103, %c166] : memref<16x304xbf16, #tpu.memory_space<vmem>>, vector<16x128xbf16>
    %c688 = arith.constant 688 : index
    %c0_104 = arith.constant 0 : index
    %103 = vector.load %arg9[%c688, %c0_104] : memref<784x128xbf16, #tpu.memory_space<vmem>>, vector<16x128xbf16>
    tpu.vector_store %arg9[%c688, %c0_104], %102 {strides = array<i32>} : memref<784x128xbf16, #tpu.memory_space<vmem>>, vector<16x128xbf16>,
    %c0_105 = arith.constant 0 : index
    %c168 = arith.constant 168 : index
    %104 = vector.load %arg8[%c0_105, %c168] : memref<16x304xbf16, #tpu.memory_space<vmem>>, vector<16x128xbf16>
    %c704 = arith.constant 704 : index
    %c0_106 = arith.constant 0 : index
    %105 = vector.load %arg9[%c704, %c0_106] : memref<784x128xbf16, #tpu.memory_space<vmem>>, vector<16x128xbf16>
    tpu.vector_store %arg9[%c704, %c0_106], %104 {strides = array<i32>} : memref<784x128xbf16, #tpu.memory_space<vmem>>, vector<16x128xbf16>,
    %c0_107 = arith.constant 0 : index
    %c170 = arith.constant 170 : index
    %106 = vector.load %arg8[%c0_107, %c170] : memref<16x304xbf16, #tpu.memory_space<vmem>>, vector<16x128xbf16>
    %c720 = arith.constant 720 : index
    %c0_108 = arith.constant 0 : index
    %107 = vector.load %arg9[%c720, %c0_108] : memref<784x128xbf16, #tpu.memory_space<vmem>>, vector<16x128xbf16>
    tpu.vector_store %arg9[%c720, %c0_108], %106 {strides = array<i32>} : memref<784x128xbf16, #tpu.memory_space<vmem>>, vector<16x128xbf16>,
    %c0_109 = arith.constant 0 : index
    %c172 = arith.constant 172 : index
    %108 = vector.load %arg8[%c0_109, %c172] : memref<16x304xbf16, #tpu.memory_space<vmem>>, vector<16x128xbf16>
    %c736 = arith.constant 736 : index
    %c0_110 = arith.constant 0 : index
    %109 = vector.load %arg9[%c736, %c0_110] : memref<784x128xbf16, #tpu.memory_space<vmem>>, vector<16x128xbf16>
    tpu.vector_store %arg9[%c736, %c0_110], %108 {strides = array<i32>} : memref<784x128xbf16, #tpu.memory_space<vmem>>, vector<16x128xbf16>,
    %c0_111 = arith.constant 0 : index
    %c174 = arith.constant 174 : index
    %110 = vector.load %arg8[%c0_111, %c174] : memref<16x304xbf16, #tpu.memory_space<vmem>>, vector<16x128xbf16>
    %c752 = arith.constant 752 : index
    %c0_112 = arith.constant 0 : index
    %111 = vector.load %arg9[%c752, %c0_112] : memref<784x128xbf16, #tpu.memory_space<vmem>>, vector<16x128xbf16>
    tpu.vector_store %arg9[%c752, %c0_112], %110 {strides = array<i32>} : memref<784x128xbf16, #tpu.memory_space<vmem>>, vector<16x128xbf16>,
    %c0_113 = arith.constant 0 : index
    %c176_114 = arith.constant 176 : index
    %112 = vector.load %arg8[%c0_113, %c176_114] : memref<16x304xbf16, #tpu.memory_space<vmem>>, vector<16x128xbf16>
    %c768 = arith.constant 768 : index
    %c0_115 = arith.constant 0 : index
    %113 = vector.load %arg9[%c768, %c0_115] : memref<784x128xbf16, #tpu.memory_space<vmem>>, vector<16x128xbf16>
    tpu.vector_store %arg9[%c768, %c0_115], %112 {strides = array<i32>} : memref<784x128xbf16, #tpu.memory_space<vmem>>, vector<16x128xbf16>,
    %c0_116 = arith.constant 0 : index
    %c0_117 = arith.constant 0 : index
    %114 = vector.load %arg5[%c0_116, %c0_117] : memref<16x784xbf16, #tpu.memory_space<vmem>>, vector<16x784xbf16>
    %c0_118 = arith.constant 0 : index
    %c0_119 = arith.constant 0 : index
    %115 = vector.load %arg9[%c0_118, %c0_119] : memref<784x128xbf16, #tpu.memory_space<vmem>>, vector<784x128xbf16>
    %cst = arith.constant dense<0.000000e+00> : vector<16x128xf32>
    %116 = tpu.matmul %114, %115, %cst {dimension_numbers = #tpu.dot_dimension_numbers<[1], [0], [0], [1], [0, 0, 1, 1], [], []>} : vector<16x784xbf16>, vector<784x128xbf16>, vector<16x128xf32> -> vector<16x128xf32>
    %c0_120 = arith.constant 0 : index
    %c0_121 = arith.constant 0 : index
    %117 = vector.load %arg6[%c0_120, %c0_121] : memref<16x1xf32, #tpu.memory_space<vmem>>, vector<16x1xf32>
    %118 = vector.broadcast %117 : vector<16x1xf32> to vector<16x128xf32>
    %119 = arith.addf %116, %118 : vector<16x128xf32>
    %c0_122 = arith.constant 0 : index
    %c0_123 = arith.constant 0 : index
    %c0_124 = arith.constant 0 : index
    %120 = vector.load %arg7[%c0_122, %c0_123, %c0_124] : memref<1x16x128xf32, #tpu.memory_space<vmem>>, vector<1x16x128xf32>
    %121 = vector.shape_cast %120 : vector<1x16x128xf32> to vector<16x128xf32>
    %122 = vector.shape_cast %119 : vector<16x128xf32> to vector<1x16x128xf32>
    tpu.vector_store %arg7[%c0_122, %c0_123, %c0_124], %122 {strides = array<i32>} : memref<1x16x128xf32, #tpu.memory_space<vmem>>, vector<1x16x128xf32>,
    return
  }
  func.func @transform_0(%arg0: i32, %arg1: i32) -> (i32, i32, i32) {
    %c0_i32 = arith.constant 0 : i32
    %c0_i32_0 = arith.constant 0 : i32
    return %arg0, %c0_i32, %arg1 : i32, i32, i32
  }
  func.func @transform_1(%arg0: i32, %arg1: i32) -> (i32, i32, i32) {
    %c1_i32 = arith.constant 1 : i32
    %0 = arith.muli %arg1, %c1_i32 : i32
    %c1_i32_0 = arith.constant 1 : i32
    %1 = arith.subi %0, %c1_i32_0 : i32
    %c0_i32 = arith.constant 0 : i32
    %2 = arith.maxsi %1, %c0_i32 : i32
    %c0_i32_1 = arith.constant 0 : i32
    %c0_i32_2 = arith.constant 0 : i32
    return %arg0, %c0_i32_1, %2 : i32, i32, i32
  }
  func.func @transform_2(%arg0: i32, %arg1: i32) -> (i32, i32, i32) {
    %c1_i32 = arith.constant 1 : i32
    %0 = arith.addi %arg1, %c1_i32 : i32
    %c1_i32_0 = arith.constant 1 : i32
    %1 = arith.muli %0, %c1_i32_0 : i32
    %c1_i32_1 = arith.constant 1 : i32
    %2 = arith.minsi %1, %c1_i32_1 : i32
    %c0_i32 = arith.constant 0 : i32
    %c0_i32_2 = arith.constant 0 : i32
    return %arg0, %c0_i32, %2 : i32, i32, i32
  }
  func.func @transform_3(%arg0: i32, %arg1: i32) -> (i32, i32) {
    %c0_i32 = arith.constant 0 : i32
    %c0_i32_0 = arith.constant 0 : i32
    %c0_i32_1 = arith.constant 0 : i32
    return %c0_i32, %c0_i32_0 : i32, i32
  }
  func.func @transform_4(%arg0: i32, %arg1: i32) -> (i32, i32) {
    %c0_i32 = arith.constant 0 : i32
    %c0_i32_0 = arith.constant 0 : i32
    %c0_i32_1 = arith.constant 0 : i32
    return %c0_i32, %c0_i32_0 : i32, i32
  }
  func.func @transform_5(%arg0: i32, %arg1: i32) -> (i32, i32, i32) {
    %c0_i32 = arith.constant 0 : i32
    %c0_i32_0 = arith.constant 0 : i32
    return %arg0, %c0_i32, %arg1 : i32, i32, i32
  }
}

</mosaic_0001>

<llo_original>
// kernel: bicnn_forward.1
$region0: #{bicnn_forward.1}
  #allocation0 [shape = 'u32[]', space=smem, size = 0x4, offset = 0x4, fixed_abs, tag = 'smem constant byte address 0x4 - core index']
  #allocation1 [shape = 'u32[144,128]{1,0:T(1,128)}', space=vmem, size = 0x12000, scoped, tag = 'internal scratch']
  #allocation2 [shape = 'bf16[16,304]{1,0:T(16,128)(2,1)}', space=vmem, size = 0x3000, scoped, tag = 'scratch operand']
  #allocation3 [shape = 'bf16[784,128]{1,0:T(16,128)(2,1)}', space=vmem, size = 0x31000, scoped, tag = 'scratch operand']
  %s0 = inlined_call_operand.vmem [shape: f32[2,16,256], index: 0, kind: input, shape index: {}, may-alias: {0,1,2}]
  %s1 = inlined_call_operand.vmem [shape: f32[2,16,256], index: 1, kind: input, shape index: {}, may-alias: {0,1,2}]
  %s2 = inlined_call_operand.vmem [shape: f32[2,16,256], index: 2, kind: input, shape index: {}, may-alias: {0,1,2}]
  %s3 = inlined_call_operand.vmem [shape: bf16[16,784], index: 3, kind: input, shape index: {}]
  %s4 = inlined_call_operand.vmem [shape: f32[16,1], index: 4, kind: input, shape index: {}]
  %s5 = inlined_call_operand.hbm [shape: f32[2,16,256], index: 5, kind: output, shape index: {}]
  %s6 = sld [smem:[#allocation0]]
  $region183: #{bicnn_forward.1} parent=0
    _
  %s8 = ssub.s32 1, %s6
  %s9 = scalar_select 0, %s8, %s6
  $region1: #{bicnn_forward.1} parent=0
    #allocation4 [shape = 'u8[16384]{0}', space=vmem, size = 0x4000, scoped, tag = 'input window, operand 0']
    #allocation5 [shape = 'u8[16384]{0}', space=vmem, size = 0x4000, scoped, tag = 'input window, operand 1']
    #allocation6 [shape = 'u8[16384]{0}', space=vmem, size = 0x4000, scoped, tag = 'input window, operand 2']
    #allocation7 [shape = 'u8[16384]{0}', space=vmem, size = 0x4000, scoped, tag = 'output window, operand 0']
    #allocation8 [shape = 's32[2]{0}', space=sflag, size = 0x8, scoped, tag = 'scoped memory for bicnn_forward.1']
    %10 = vsyncpa [#allocation8], 0
    %s11 = scalar_lea.sflag [#allocation8], 1
    %12 = vsyncpa %s11, 0
    loop: start=0, step=1, limit=6
    $region2: #{bicnn_forward.1} parent=1 // loop_pre_header
      _
    $region3: #{bicnn_forward.1} parent=1 // loop_header
      %s14 = sphi 0, %s18
      %p15 = scmp.ge.s32.totalorder %s14, 6
      %s21 = sphi 0, %s33
      %s22 = sphi 0, %s29
      %s23 = sphi 0, %s21
      %s24 = sphi 0, %s22
      %s25 = sphi 0, %s23
      %s26 = sphi 0, %s24
      %s38 = sphi 0, %s40
      %s41 = sphi 0, %s38
      %s42 = sphi 0, %s41
      %s58 = sphi 0, %s42
      %s72 = sphi 0, %s74
      %s75 = sphi 0, %s72
      %s76 = sphi 0, %s75
      %s92 = sphi 0, %s76
      %s106 = sphi 0, %s108
      %s109 = sphi 0, %s106
      %s110 = sphi 0, %s109
      %s126 = sphi 0, %s110
      %s130 = sphi 0, %s130
      %s132 = sphi 0, %s130
      %s133 = sphi 0, %s132
      %s147 = sphi 0, %s133
      %s151 = sphi 0, %s151
      %s153 = sphi 0, %s151
      %s154 = sphi 0, %s153
      %s168 = sphi 0, %s154
      %s176 = sphi 0, %s178
      %s179 = sphi 0, %s176
      %s180 = sphi 0, %s179
      %s196 = sphi 0, %s180
    $region4: #{bicnn_forward.1} parent=1 // loop_header_branch
      %17 = sbr.rel (%p15) target = $region8
    $region5: #{bicnn_forward.1} parent=1 // loop_body
      %s19 = ssub.s32 %s14, 1
      %s20 = ssub.s32 %s14, 2
      %s27 = sadd.s32 1, %s22
      %p28 = scmp.ge.s32.totalorder %s27, 2
      %s29 = scalar_select %p28, 0, %s27
      %s30 = sadd.s32 1, %s21
      %s31 = scalar_select %p28, %s30, %s21
      %p32 = scmp.ge.s32.totalorder %s31, 2
      %s33 = scalar_select %p32, 0, %s31
      %s34 = ssub.s32 %s21, %s33
      %s35 = ssub.s32 %s22, %s29
      %s36 = sor.u32 %s34, %s35
      %p37 = scmp.eq.s32.totalorder %s36, 0
      %s39 = sadd.s32 %s38, 1
      %s40 = scalar_select %p37, %s38, %s39
      %p43 = pneg %p37
      %p44 = scmp.eq.s32.totalorder %s14, 3
      %p45 = por %p43, %p44
      %p46 = scmp.ne.s32.totalorder %s38, %s41
      %p47 = scmp.eq.s32.totalorder %s14, 0
      %p48 = por %p46, %p47
      %p49 = scmp.ne.s32.totalorder %s38, %s41
      %p50 = scmp.eq.s32.totalorder %s19, 3
      %p51 = por %p49, %p50
      %p52 = scmp.ne.s32.totalorder %s41, %s42
      %p53 = scmp.eq.s32.totalorder %s19, 0
      %p54 = por %p52, %p53
      %p55 = scmp.ne.s32.totalorder %s41, %s42
      %p56 = scmp.eq.s32.totalorder %s20, 3
      %p57 = por %p55, %p56
      %p59 = scmp.ne.s32.totalorder %s42, %s58
      %p60 = scmp.eq.s32.totalorder %s20, 0
      %p61 = por %p59, %p60
      %s62 = ssub.s32 %s22, 1
      %p63 = scmp.gt.s32.totalorder %s62, 0
      %s64 = scalar_select %p63, %s62, 0
      %s65 = ssub.s32 %s29, 1
      %p66 = scmp.gt.s32.totalorder %s65, 0
      %s67 = scalar_select %p66, %s65, 0
      %s68 = ssub.s32 %s21, %s33
      %s69 = ssub.s32 %s64, %s67
      %s70 = sor.u32 %s68, %s69
      %p71 = scmp.eq.s32.totalorder %s70, 0
      %s73 = sadd.s32 %s72, 1
      %s74 = scalar_select %p71, %s72, %s73
      %p77 = pneg %p71
      %p78 = scmp.eq.s32.totalorder %s14, 3
      %p79 = por %p77, %p78
      %p80 = scmp.ne.s32.totalorder %s72, %s75
      %p81 = scmp.eq.s32.totalorder %s14, 0
      %p82 = por %p80, %p81
      %p83 = scmp.ne.s32.totalorder %s72, %s75
      %p84 = scmp.eq.s32.totalorder %s19, 3
      %p85 = por %p83, %p84
      %p86 = scmp.ne.s32.totalorder %s75, %s76
      %p87 = scmp.eq.s32.totalorder %s19, 0
      %p88 = por %p86, %p87
      %p89 = scmp.ne.s32.totalorder %s75, %s76
      %p90 = scmp.eq.s32.totalorder %s20, 3
      %p91 = por %p89, %p90
      %p93 = scmp.ne.s32.totalorder %s76, %s92
      %p94 = scmp.eq.s32.totalorder %s20, 0
      %p95 = por %p93, %p94
      %s96 = sadd.s32 %s22, 1
      %p97 = scmp.lt.s32.totalorder %s96, 1
      %s98 = scalar_select %p97, %s96, 1
      %s99 = sadd.s32 %s29, 1
      %p100 = scmp.lt.s32.totalorder %s99, 1
      %s101 = scalar_select %p100, %s99, 1
      %s102 = ssub.s32 %s21, %s33
      %s103 = ssub.s32 %s98, %s101
      %s104 = sor.u32 %s102, %s103
      %p105 = scmp.eq.s32.totalorder %s104, 0
      %s107 = sadd.s32 %s106, 1
      %s108 = scalar_select %p105, %s106, %s107
      %p111 = pneg %p105
      %p112 = scmp.eq.s32.totalorder %s14, 3
      %p113 = por %p111, %p112
      %p114 = scmp.ne.s32.totalorder %s106, %s109
      %p115 = scmp.eq.s32.totalorder %s14, 0
      %p116 = por %p114, %p115
      %p117 = scmp.ne.s32.totalorder %s106, %s109
      %p118 = scmp.eq.s32.totalorder %s19, 3
      %p119 = por %p117, %p118
      %p120 = scmp.ne.s32.totalorder %s109, %s110
      %p121 = scmp.eq.s32.totalorder %s19, 0
      %p122 = por %p120, %p121
      %p123 = scmp.ne.s32.totalorder %s109, %s110
      %p124 = scmp.eq.s32.totalorder %s20, 3
      %p125 = por %p123, %p124
      %p127 = scmp.ne.s32.totalorder %s110, %s126
      %p128 = scmp.eq.s32.totalorder %s20, 0
      %p129 = por %p127, %p128
      %s131 = sadd.s32 %s130, 1
      %p134 = scmp.eq.s32.totalorder %s14, 3
      %p135 = scmp.ne.s32.totalorder %s130, %s132
      %p136 = scmp.eq.s32.totalorder %s14, 0
      %p137 = por %p135, %p136
      %p138 = scmp.ne.s32.totalorder %s130, %s132
      %p139 = scmp.eq.s32.totalorder %s19, 3
      %p140 = por %p138, %p139
      %p141 = scmp.ne.s32.totalorder %s132, %s133
      %p142 = scmp.eq.s32.totalorder %s19, 0
      %p143 = por %p141, %p142
      %p144 = scmp.ne.s32.totalorder %s132, %s133
      %p145 = scmp.eq.s32.totalorder %s20, 3
      %p146 = por %p144, %p145
      %p148 = scmp.ne.s32.totalorder %s133, %s147
      %p149 = scmp.eq.s32.totalorder %s20, 0
      %p150 = por %p148, %p149
      %s152 = sadd.s32 %s151, 1
      %p155 = scmp.eq.s32.totalorder %s14, 3
      %p156 = scmp.ne.s32.totalorder %s151, %s153
      %p157 = scmp.eq.s32.totalorder %s14, 0
      %p158 = por %p156, %p157
      %p159 = scmp.ne.s32.totalorder %s151, %s153
      %p160 = scmp.eq.s32.totalorder %s19, 3
      %p161 = por %p159, %p160
      %p162 = scmp.ne.s32.totalorder %s153, %s154
      %p163 = scmp.eq.s32.totalorder %s19, 0
      %p164 = por %p162, %p163
      %p165 = scmp.ne.s32.totalorder %s153, %s154
      %p166 = scmp.eq.s32.totalorder %s20, 3
      %p167 = por %p165, %p166
      %p169 = scmp.ne.s32.totalorder %s154, %s168
      %p170 = scmp.eq.s32.totalorder %s20, 0
      %p171 = por %p169, %p170
      %s172 = ssub.s32 %s21, %s33
      %s173 = ssub.s32 %s22, %s29
      %s174 = sor.u32 %s172, %s173
      %p175 = scmp.eq.s32.totalorder %s174, 0
      %s177 = sadd.s32 %s176, 1
      %s178 = scalar_select %p175, %s176, %s177
      %p181 = pneg %p175
      %p182 = scmp.eq.s32.totalorder %s14, 3
      %p183 = por %p181, %p182
      %p184 = scmp.ne.s32.totalorder %s176, %s179
      %p185 = scmp.eq.s32.totalorder %s14, 0
      %p186 = por %p184, %p185
      %p187 = scmp.ne.s32.totalorder %s176, %s179
      %p188 = scmp.eq.s32.totalorder %s19, 3
      %p189 = por %p187, %p188
      %p190 = scmp.ne.s32.totalorder %s179, %s180
      %p191 = scmp.eq.s32.totalorder %s19, 0
      %p192 = por %p190, %p191
      %p193 = scmp.ne.s32.totalorder %s179, %s180
      %p194 = scmp.eq.s32.totalorder %s20, 3
      %p195 = por %p193, %p194
      %p197 = scmp.ne.s32.totalorder %s180, %s196
      %p198 = scmp.eq.s32.totalorder %s20, 0
      %p199 = por %p197, %p198
      %p200 = scmp.le.s32.totalorder 1, %s14
      %p201 = scmp.lt.s32.totalorder %s14, 5
      %p202 = pnand %p200, %p201
      %p203 = pneg %p202
      // Predicated region
      $region9: #{bicnn_forward.1} parent=5 // pred_check
        _
      $region10: #{bicnn_forward.1} parent=5 // pred_check_branch
        %205 = sbr.rel (%p202) target = $region12
      $region11: #{bicnn_forward.1} parent=5 // pred_region
        %s206 = ssub.s32 %s14, 1
        // Predicated region
        $region13: #{bicnn_forward.1} parent=11 // pred_check
          %p207 = pneg %p143
        $region14: #{bicnn_forward.1} parent=11 // pred_check_branch
          %209 = sbr.rel (%p207) target = $region16
        $region15: #{bicnn_forward.1} parent=11 // pred_region
          _
        $region16: #{bicnn_forward.1} parent=11 // pred_fallthru
          _
        // Predicated region
        $region17: #{bicnn_forward.1} parent=11 // pred_check
          %p210 = pneg %p164
        $region18: #{bicnn_forward.1} parent=11 // pred_check_branch
          %212 = sbr.rel (%p210) target = $region20
        $region19: #{bicnn_forward.1} parent=11 // pred_region
          _
        $region20: #{bicnn_forward.1} parent=11 // pred_fallthru
          _
      $region12: #{bicnn_forward.1} parent=5 // pred_fallthru
        _
      %p213 = scmp.lt.s32.totalorder %s14, 4
      // Predicated region
      $region21: #{bicnn_forward.1} parent=5 // pred_check
        %p214 = pneg %p213
      $region22: #{bicnn_forward.1} parent=5 // pred_check_branch
        %216 = sbr.rel (%p214) target = $region24
      $region23: #{bicnn_forward.1} parent=5 // pred_region
        // Predicated region
        $region25: #{bicnn_forward.1} parent=23 // pred_check
          %p217 = pneg %p48
        $region26: #{bicnn_forward.1} parent=23 // pred_check_branch
          %219 = sbr.rel (%p217) target = $region28
        $region27: #{bicnn_forward.1} parent=23 // pred_region
          %s220 = sand.u32 %s38, 1
          %s221 = sand.u32 %s38, 1
          %s222 = smul.addr %s221, 16
          %s223 = scalar_lea.vmem [#allocation4], %s222
          %s224 = smul.addr %s21, 4
          %s225 = sadd.s32 %s22, %s224
          %s226 = smul.addr %s225, 8
          %s227 = scalar_lea.vmem %s0, %s226
          // Predicated region
          $region29: #{bicnn_forward.1} parent=27 // pred_check
            _
          $region30: #{bicnn_forward.1} parent=27 // pred_check_branch
            %229 = sbr.rel (0) target = $region32
          $region31: #{bicnn_forward.1} parent=27 // pred_region
            // Predicated region
            $region33: #{bicnn_forward.1} parent=31 // pred_check
              _
            $region34: #{bicnn_forward.1} parent=31 // pred_check_branch
              %231 = sbr.rel (0) target = $region36
            $region35: #{bicnn_forward.1} parent=31 // pred_region
              // Predicated region
              $region48: #{bicnn_forward.1} parent=35 // pred_check
                _
              $region49: #{bicnn_forward.1} parent=35 // pred_check_branch
                %248 = sbr.rel (0) target = $region51
              $region50: #{bicnn_forward.1} parent=35 // pred_region
                loop: start=0, step=1, limit=1
                $region52: #{bicnn_forward.1} parent=50 // loop_pre_header
                  _
                $region53: #{bicnn_forward.1} parent=50 // loop_header
                  %s250 = sphi 0, %s254
                  %p251 = scmp.ge.s32.totalorder %s250, 1
                  %s255 = sphi %s227, %s227
                  %s256 = sphi %s223, %s223
                $region54: #{bicnn_forward.1} parent=50 // loop_header_branch
                  %253 = sbr.rel (%p251) target = $region58
                $region55: #{bicnn_forward.1} parent=50 // loop_body
                  %v257 = vld [vmem:[%s255] sm:$0xff]
                  %258 = vst [vmem:[%s256] sm:$0xff] %v257
                  %v259 = vld [vmem:[%s255 + $0x10] sm:$0xff]
                  %260 = vst [vmem:[%s256 + $0x8] sm:$0xff] %v259
                $region56: #{bicnn_forward.1} parent=50 // loop_footer
                  %s254 = sadd.s32 1, %s250
                $region57: #{bicnn_forward.1} parent=50 // loop_footer_branch
                  %249 = sbr.rel target = $region53
                $region58: #{bicnn_forward.1} parent=50 // loop_exit
                  _
              $region51: #{bicnn_forward.1} parent=35 // pred_fallthru
                _
              // Predicated region
              $region59: #{bicnn_forward.1} parent=35 // pred_check
                _
              $region60: #{bicnn_forward.1} parent=35 // pred_check_branch
                %262 = sbr.rel target = $region62
              $region61: #{bicnn_forward.1} parent=35 // pred_region
                _
              $region62: #{bicnn_forward.1} parent=35 // pred_fallthru
                _
            $region36: #{bicnn_forward.1} parent=31 // pred_fallthru
              _
            // Predicated region
            $region37: #{bicnn_forward.1} parent=31 // pred_check
              _
            $region38: #{bicnn_forward.1} parent=31 // pred_check_branch
              %233 = sbr.rel target = $region40
            $region39: #{bicnn_forward.1} parent=31 // pred_region
              loop: start=0, step=1, limit=1
              $region41: #{bicnn_forward.1} parent=39 // loop_pre_header
                _
              $region42: #{bicnn_forward.1} parent=39 // loop_header
                %s236 = sphi 0, %s240
                %p237 = scmp.ge.s32.totalorder %s236, 1
                %s241 = sphi %s227, %s227
                %s242 = sphi %s223, %s223
              $region43: #{bicnn_forward.1} parent=39 // loop_header_branch
                %239 = sbr.rel (%p237) target = $region47
              $region44: #{bicnn_forward.1} parent=39 // loop_body
                %v243 = vld [vmem:[%s241] sm:$0xff]
                %244 = vst [vmem:[%s242] sm:$0xff] %v243
                %v245 = vld [vmem:[%s241 + $0x10] sm:$0xff]
                %246 = vst [vmem:[%s242 + $0x8] sm:$0xff] %v245
              $region45: #{bicnn_forward.1} parent=39 // loop_footer
                %s240 = sadd.s32 1, %s236
              $region46: #{bicnn_forward.1} parent=39 // loop_footer_branch
                %235 = sbr.rel target = $region42
              $region47: #{bicnn_forward.1} parent=39 // loop_exit
                _
            $region40: #{bicnn_forward.1} parent=31 // pred_fallthru
              _
          $region32: #{bicnn_forward.1} parent=27 // pred_fallthru
            _
          %263 = vnop
        $region28: #{bicnn_forward.1} parent=23 // pred_fallthru
          _
        // Predicated region
        $region63: #{bicnn_forward.1} parent=23 // pred_check
          %p264 = pneg %p82
        $region64: #{bicnn_forward.1} parent=23 // pred_check_branch
          %266 = sbr.rel (%p264) target = $region66
        $region65: #{bicnn_forward.1} parent=23 // pred_region
          %s267 = sand.u32 %s72, 1
          %s268 = sand.u32 %s72, 1
          %s269 = smul.addr %s268, 16
          %s270 = scalar_lea.vmem [#allocation5], %s269
          %s271 = ssub.s32 %s22, 1
          %p272 = scmp.gt.s32.totalorder %s271, 0
          %s273 = scalar_select %p272, %s271, 0
          %s274 = smul.addr %s21, 4
          %s275 = sadd.s32 %s273, %s274
          %s276 = smul.addr %s275, 8
          %s277 = scalar_lea.vmem %s1, %s276
          // Predicated region
          $region67: #{bicnn_forward.1} parent=65 // pred_check
            _
          $region68: #{bicnn_forward.1} parent=65 // pred_check_branch
            %279 = sbr.rel (0) target = $region70
          $region69: #{bicnn_forward.1} parent=65 // pred_region
            // Predicated region
            $region71: #{bicnn_forward.1} parent=69 // pred_check
              _
            $region72: #{bicnn_forward.1} parent=69 // pred_check_branch
              %281 = sbr.rel (0) target = $region74
            $region73: #{bicnn_forward.1} parent=69 // pred_region
              // Predicated region
              $region86: #{bicnn_forward.1} parent=73 // pred_check
                _
              $region87: #{bicnn_forward.1} parent=73 // pred_check_branch
                %298 = sbr.rel (0) target = $region89
              $region88: #{bicnn_forward.1} parent=73 // pred_region
                loop: start=0, step=1, limit=1
                $region90: #{bicnn_forward.1} parent=88 // loop_pre_header
                  _
                $region91: #{bicnn_forward.1} parent=88 // loop_header
                  %s300 = sphi 0, %s304
                  %p301 = scmp.ge.s32.totalorder %s300, 1
                  %s305 = sphi %s277, %s277
                  %s306 = sphi %s270, %s270
                $region92: #{bicnn_forward.1} parent=88 // loop_header_branch
                  %303 = sbr.rel (%p301) target = $region96
                $region93: #{bicnn_forward.1} parent=88 // loop_body
                  %v307 = vld [vmem:[%s305] sm:$0xff]
                  %308 = vst [vmem:[%s306] sm:$0xff] %v307
                  %v309 = vld [vmem:[%s305 + $0x10] sm:$0xff]
                  %310 = vst [vmem:[%s306 + $0x8] sm:$0xff] %v309
                $region94: #{bicnn_forward.1} parent=88 // loop_footer
                  %s304 = sadd.s32 1, %s300
                $region95: #{bicnn_forward.1} parent=88 // loop_footer_branch
                  %299 = sbr.rel target = $region91
                $region96: #{bicnn_forward.1} parent=88 // loop_exit
                  _
              $region89: #{bicnn_forward.1} parent=73 // pred_fallthru
                _
              // Predicated region
              $region97: #{bicnn_forward.1} parent=73 // pred_check
                _
              $region98: #{bicnn_forward.1} parent=73 // pred_check_branch
                %312 = sbr.rel target = $region100
              $region99: #{bicnn_forward.1} parent=73 // pred_region
                _
              $region100: #{bicnn_forward.1} parent=73 // pred_fallthru
                _
            $region74: #{bicnn_forward.1} parent=69 // pred_fallthru
              _
            // Predicated region
            $region75: #{bicnn_forward.1} parent=69 // pred_check
              _
            $region76: #{bicnn_forward.1} parent=69 // pred_check_branch
              %283 = sbr.rel target = $region78
            $region77: #{bicnn_forward.1} parent=69 // pred_region
              loop: start=0, step=1, limit=1
              $region79: #{bicnn_forward.1} parent=77 // loop_pre_header
                _
              $region80: #{bicnn_forward.1} parent=77 // loop_header
                %s286 = sphi 0, %s290
                %p287 = scmp.ge.s32.totalorder %s286, 1
                %s291 = sphi %s277, %s277
                %s292 = sphi %s270, %s270
              $region81: #{bicnn_forward.1} parent=77 // loop_header_branch
                %289 = sbr.rel (%p287) target = $region85
              $region82: #{bicnn_forward.1} parent=77 // loop_body
                %v293 = vld [vmem:[%s291] sm:$0xff]
                %294 = vst [vmem:[%s292] sm:$0xff] %v293
                %v295 = vld [vmem:[%s291 + $0x10] sm:$0xff]
                %296 = vst [vmem:[%s292 + $0x8] sm:$0xff] %v295
              $region83: #{bicnn_forward.1} parent=77 // loop_footer
                %s290 = sadd.s32 1, %s286
              $region84: #{bicnn_forward.1} parent=77 // loop_footer_branch
                %285 = sbr.rel target = $region80
              $region85: #{bicnn_forward.1} parent=77 // loop_exit
                _
            $region78: #{bicnn_forward.1} parent=69 // pred_fallthru
              _
          $region70: #{bicnn_forward.1} parent=65 // pred_fallthru
            _
          %313 = vnop
        $region66: #{bicnn_forward.1} parent=23 // pred_fallthru
          _
        // Predicated region
        $region101: #{bicnn_forward.1} parent=23 // pred_check
          %p314 = pneg %p116
        $region102: #{bicnn_forward.1} parent=23 // pred_check_branch
          %316 = sbr.rel (%p314) target = $region104
        $region103: #{bicnn_forward.1} parent=23 // pred_region
          %s317 = sand.u32 %s106, 1
          %s318 = sand.u32 %s106, 1
          %s319 = smul.addr %s318, 16
          %s320 = scalar_lea.vmem [#allocation6], %s319
          %s321 = sadd.s32 %s22, 1
          %p322 = scmp.lt.s32.totalorder %s321, 1
          %s323 = scalar_select %p322, %s321, 1
          %s324 = smul.addr %s21, 4
          %s325 = sadd.s32 %s323, %s324
          %s326 = smul.addr %s325, 8
          %s327 = scalar_lea.vmem %s2, %s326
          // Predicated region
          $region105: #{bicnn_forward.1} parent=103 // pred_check
            _
          $region106: #{bicnn_forward.1} parent=103 // pred_check_branch
            %329 = sbr.rel (0) target = $region108
          $region107: #{bicnn_forward.1} parent=103 // pred_region
            // Predicated region
            $region109: #{bicnn_forward.1} parent=107 // pred_check
              _
            $region110: #{bicnn_forward.1} parent=107 // pred_check_branch
              %331 = sbr.rel (0) target = $region112
            $region111: #{bicnn_forward.1} parent=107 // pred_region
              // Predicated region
              $region124: #{bicnn_forward.1} parent=111 // pred_check
                _
              $region125: #{bicnn_forward.1} parent=111 // pred_check_branch
                %348 = sbr.rel (0) target = $region127
              $region126: #{bicnn_forward.1} parent=111 // pred_region
                loop: start=0, step=1, limit=1
                $region128: #{bicnn_forward.1} parent=126 // loop_pre_header
                  _
                $region129: #{bicnn_forward.1} parent=126 // loop_header
                  %s350 = sphi 0, %s354
                  %p351 = scmp.ge.s32.totalorder %s350, 1
                  %s355 = sphi %s327, %s327
                  %s356 = sphi %s320, %s320
                $region130: #{bicnn_forward.1} parent=126 // loop_header_branch
                  %353 = sbr.rel (%p351) target = $region134
                $region131: #{bicnn_forward.1} parent=126 // loop_body
                  %v357 = vld [vmem:[%s355] sm:$0xff]
                  %358 = vst [vmem:[%s356] sm:$0xff] %v357
                  %v359 = vld [vmem:[%s355 + $0x10] sm:$0xff]
                  %360 = vst [vmem:[%s356 + $0x8] sm:$0xff] %v359
                $region132: #{bicnn_forward.1} parent=126 // loop_footer
                  %s354 = sadd.s32 1, %s350
                $region133: #{bicnn_forward.1} parent=126 // loop_footer_branch
                  %349 = sbr.rel target = $region129
                $region134: #{bicnn_forward.1} parent=126 // loop_exit
                  _
              $region127: #{bicnn_forward.1} parent=111 // pred_fallthru
                _
              // Predicated region
              $region135: #{bicnn_forward.1} parent=111 // pred_check
                _
              $region136: #{bicnn_forward.1} parent=111 // pred_check_branch
                %362 = sbr.rel target = $region138
              $region137: #{bicnn_forward.1} parent=111 // pred_region
                _
              $region138: #{bicnn_forward.1} parent=111 // pred_fallthru
                _
            $region112: #{bicnn_forward.1} parent=107 // pred_fallthru
              _
            // Predicated region
            $region113: #{bicnn_forward.1} parent=107 // pred_check
              _
            $region114: #{bicnn_forward.1} parent=107 // pred_check_branch
              %333 = sbr.rel target = $region116
            $region115: #{bicnn_forward.1} parent=107 // pred_region
              loop: start=0, step=1, limit=1
              $region117: #{bicnn_forward.1} parent=115 // loop_pre_header
                _
              $region118: #{bicnn_forward.1} parent=115 // loop_header
                %s336 = sphi 0, %s340
                %p337 = scmp.ge.s32.totalorder %s336, 1
                %s341 = sphi %s327, %s327
                %s342 = sphi %s320, %s320
              $region119: #{bicnn_forward.1} parent=115 // loop_header_branch
                %339 = sbr.rel (%p337) target = $region123
              $region120: #{bicnn_forward.1} parent=115 // loop_body
                %v343 = vld [vmem:[%s341] sm:$0xff]
                %344 = vst [vmem:[%s342] sm:$0xff] %v343
                %v345 = vld [vmem:[%s341 + $0x10] sm:$0xff]
                %346 = vst [vmem:[%s342 + $0x8] sm:$0xff] %v345
              $region121: #{bicnn_forward.1} parent=115 // loop_footer
                %s340 = sadd.s32 1, %s336
              $region122: #{bicnn_forward.1} parent=115 // loop_footer_branch
                %335 = sbr.rel target = $region118
              $region123: #{bicnn_forward.1} parent=115 // loop_exit
                _
            $region116: #{bicnn_forward.1} parent=107 // pred_fallthru
              _
          $region108: #{bicnn_forward.1} parent=103 // pred_fallthru
            _
          %363 = vnop
        $region104: #{bicnn_forward.1} parent=23 // pred_fallthru
          _
      $region24: #{bicnn_forward.1} parent=5 // pred_fallthru
        _
      %p364 = scmp.le.s32.totalorder 1, %s14
      %p365 = scmp.lt.s32.totalorder %s14, 5
      %p366 = pnand %p364, %p365
      %p367 = pneg %p366
      // Predicated region
      $region139: #{bicnn_forward.1} parent=5 // pred_check
        _
      $region140: #{bicnn_forward.1} parent=5 // pred_check_branch
        %369 = sbr.rel (%p366) target = $region142
      $region141: #{bicnn_forward.1} parent=5 // pred_region
        %s370 = ssub.s32 %s14, 1
        %s371 = sand.u32 %s41, 1
        %s372 = sand.u32 %s41, 1
        %s373 = smul.addr %s372, 16
        %s374 = scalar_lea.vmem [#allocation4], %s373
        // Predicated region
        $region143: #{bicnn_forward.1} parent=141 // pred_check
          %p375 = pneg %p54
        $region144: #{bicnn_forward.1} parent=141 // pred_check_branch
          %377 = sbr.rel (%p375) target = $region146
        $region145: #{bicnn_forward.1} parent=141 // pred_region
          _
        $region146: #{bicnn_forward.1} parent=141 // pred_fallthru
          _
        %s378 = sand.u32 %s75, 1
        %s379 = sand.u32 %s75, 1
        %s380 = smul.addr %s379, 16
        %s381 = scalar_lea.vmem [#allocation5], %s380
        // Predicated region
        $region147: #{bicnn_forward.1} parent=141 // pred_check
          %p382 = pneg %p88
        $region148: #{bicnn_forward.1} parent=141 // pred_check_branch
          %384 = sbr.rel (%p382) target = $region150
        $region149: #{bicnn_forward.1} parent=141 // pred_region
          _
        $region150: #{bicnn_forward.1} parent=141 // pred_fallthru
          _
        %s385 = sand.u32 %s109, 1
        %s386 = sand.u32 %s109, 1
        %s387 = smul.addr %s386, 16
        %s388 = scalar_lea.vmem [#allocation6], %s387
        // Predicated region
        $region151: #{bicnn_forward.1} parent=141 // pred_check
          %p389 = pneg %p122
        $region152: #{bicnn_forward.1} parent=141 // pred_check_branch
          %391 = sbr.rel (%p389) target = $region154
        $region153: #{bicnn_forward.1} parent=141 // pred_region
          _
        $region154: #{bicnn_forward.1} parent=141 // pred_fallthru
          _
        %s392 = sand.u32 %s41, 1
        %s393 = sand.u32 %s41, 1
        %s394 = smul.addr %s393, 16
        %s395 = scalar_lea.vmem [#allocation4], %s394
        %p396 = pneg %p54
        %p397 = pneg %p51
        %s398 = sand.u32 %s75, 1
        %s399 = sand.u32 %s75, 1
        %s400 = smul.addr %s399, 16
        %s401 = scalar_lea.vmem [#allocation5], %s400
        %p402 = pneg %p88
        %p403 = pneg %p85
        %s404 = sand.u32 %s109, 1
        %s405 = sand.u32 %s109, 1
        %s406 = smul.addr %s405, 16
        %s407 = scalar_lea.vmem [#allocation6], %s406
        %p408 = pneg %p122
        %p409 = pneg %p119
        %p410 = pneg %p143
        %p411 = pneg %p140
        %p412 = pneg %p164
        %p413 = pneg %p161
        %p414 = pneg %p192
        %p415 = pneg %p189
        %s416 = sand.u32 %s179, 1
        %s417 = scalar_lea.sflag [#allocation8], %s416
        %s418 = sand.u32 %s179, 1
        %s419 = smul.addr %s418, 16
        %s420 = scalar_lea.vmem [#allocation7], %s419
        %s421 = ssub.s32 %s24, 1
        %p422 = scmp.gt.s32.totalorder %s421, 0
        %s423 = scalar_select %p422, %s421, 0
        %s424 = sadd.s32 %s24, 1
        %p425 = scmp.lt.s32.totalorder %s424, 1
        %s426 = scalar_select %p425, %s424, 1
        %v428 = vld [vmem:[%s374] sm:$0xff]
        %v429 = vld [vmem:[%s374 + $0x8] sm:$0xff]
        %v430 = vpack.c.bf16 %v429, %v428
        %431 = vst [vmem:[#allocation2 + $0x8] sm:$0xff] %v430
        %p432 = scmp.eq.s32.totalorder %s24, 0
        // Predicated region
        $region155: #{bicnn_forward.1} parent=141 // pred_check
          %p433 = pneg %p432
        $region156: #{bicnn_forward.1} parent=141 // pred_check_branch
          %435 = sbr.rel (%p433) target = $region158
        $region157: #{bicnn_forward.1} parent=141 // pred_region
          %436 = vst [vmem:[#allocation2] sm:$0xff] 0
        $region158: #{bicnn_forward.1} parent=141 // pred_fallthru
          _
        %p437 = scmp.gt.s32.totalorder %s24, 0
        // Predicated region
        $region159: #{bicnn_forward.1} parent=141 // pred_check
          %p438 = pneg %p437
        $region160: #{bicnn_forward.1} parent=141 // pred_check_branch
          %440 = sbr.rel (%p438) target = $region162
        $region161: #{bicnn_forward.1} parent=141 // pred_region
          %v441 = vld [vmem:[%s381] sm:$0xff]
          %v442 = vld [vmem:[%s381 + $0x8] sm:$0xff]
          %v443 = vpack.c.bf16 %v442, %v441
          %vm444 = vcmask 1048192
          %445 = vst.msk [vmem:[#allocation2] sm:$0xff] %vm444, %v443
        $region162: #{bicnn_forward.1} parent=141 // pred_fallthru
          _
        %p446 = scmp.eq.s32.totalorder %s24, 1
        // Predicated region
        $region163: #{bicnn_forward.1} parent=141 // pred_check
          %p447 = pneg %p446
        $region164: #{bicnn_forward.1} parent=141 // pred_check_branch
          %449 = sbr.rel (%p447) target = $region166
        $region165: #{bicnn_forward.1} parent=141 // pred_region
          %vm450 = vcmask 392192
          %451 = vst.msk [vmem:[#allocation2 + $0x10] sm:$0xff] %vm450, 0
        $region166: #{bicnn_forward.1} parent=141 // pred_fallthru
          _
        %p452 = scmp.lt.s32.totalorder %s24, 1
        // Predicated region
        $region167: #{bicnn_forward.1} parent=141 // pred_check
          %p453 = pneg %p452
        $region168: #{bicnn_forward.1} parent=141 // pred_check_branch
          %455 = sbr.rel (%p453) target = $region170
        $region169: #{bicnn_forward.1} parent=141 // pred_region
          %v456 = vld [vmem:[%s388] sm:$0xff]
          %v457 = vld [vmem:[%s388 + $0x8] sm:$0xff]
          %v458 = vpack.c.bf16 %v457, %v456
          %vm459 = vcmask 392192
          %460 = vst.msk [vmem:[#allocation2 + $0x10] sm:$0xff] %vm459, %v458
        $region170: #{bicnn_forward.1} parent=141 // pred_fallthru
          _
        %v461 = vld [vmem:[#allocation2] sm:$0xff]
        %v462 = vld [vmem:[#allocation2 + $0x8] sm:$0xff]
        %465 = vrot.lane.b32.xlu0 %v461, 48
        %v466 = vpop.permute.xlu0 %465
        %467 = vrot.lane.b32.xlu0 %v462, 48
        %v468 = vpop.permute.xlu0 %467
        %vm469 = vcmask 392192
        %v470 = vsel %vm469, %v466, %v468
        %472 = vst [vmem:[#allocation3] sm:$0xff] %v470
        %v473 = vld [vmem:[#allocation2] sm:$0xff]
        %v474 = vld [vmem:[#allocation2 + $0x8] sm:$0xff]
        %477 = vrot.lane.b32.xlu0 %v473, 46
        %v478 = vpop.permute.xlu0 %477
        %479 = vrot.lane.b32.xlu0 %v474, 46
        %v480 = vpop.permute.xlu0 %479
        %vm481 = vcmask 375808
        %v482 = vsel %vm481, %v478, %v480
        %484 = vst [vmem:[#allocation3 + $0x8] sm:$0xff] %v482
        %v485 = vld [vmem:[#allocation2] sm:$0xff]
        %v486 = vld [vmem:[#allocation2 + $0x8] sm:$0xff]
        %489 = vrot.lane.b32.xlu0 %v485, 44
        %v490 = vpop.permute.xlu0 %489
        %491 = vrot.lane.b32.xlu0 %v486, 44
        %v492 = vpop.permute.xlu0 %491
        %vm493 = vcmask 359424
        %v494 = vsel %vm493, %v490, %v492
        %496 = vst [vmem:[#allocation3 + $0x10] sm:$0xff] %v494
        %v497 = vld [vmem:[#allocation2] sm:$0xff]
        %v498 = vld [vmem:[#allocation2 + $0x8] sm:$0xff]
        %501 = vrot.lane.b32.xlu0 %v497, 42
        %v502 = vpop.permute.xlu0 %501
        %503 = vrot.lane.b32.xlu0 %v498, 42
        %v504 = vpop.permute.xlu0 %503
        %vm505 = vcmask 343040
        %v506 = vsel %vm505, %v502, %v504
        %508 = vst [vmem:[#allocation3 + $0x18] sm:$0xff] %v506
        %v509 = vld [vmem:[#allocation2] sm:$0xff]
        %v510 = vld [vmem:[#allocation2 + $0x8] sm:$0xff]
        %513 = vrot.lane.b32.xlu0 %v509, 40
        %v514 = vpop.permute.xlu0 %513
        %515 = vrot.lane.b32.xlu0 %v510, 40
        %v516 = vpop.permute.xlu0 %515
        %vm517 = vcmask 326656
        %v518 = vsel %vm517, %v514, %v516
        %520 = vst [vmem:[#allocation3 + $0x20] sm:$0xff] %v518
        %v521 = vld [vmem:[#allocation2] sm:$0xff]
        %v522 = vld [vmem:[#allocation2 + $0x8] sm:$0xff]
        %525 = vrot.lane.b32.xlu0 %v521, 38
        %v526 = vpop.permute.xlu0 %525
        %527 = vrot.lane.b32.xlu0 %v522, 38
        %v528 = vpop.permute.xlu0 %527
        %vm529 = vcmask 310272
        %v530 = vsel %vm529, %v526, %v528
        %532 = vst [vmem:[#allocation3 + $0x28] sm:$0xff] %v530
        %v533 = vld [vmem:[#allocation2] sm:$0xff]
        %v534 = vld [vmem:[#allocation2 + $0x8] sm:$0xff]
        %537 = vrot.lane.b32.xlu0 %v533, 36
        %v538 = vpop.permute.xlu0 %537
        %539 = vrot.lane.b32.xlu0 %v534, 36
        %v540 = vpop.permute.xlu0 %539
        %vm541 = vcmask 293888
        %v542 = vsel %vm541, %v538, %v540
        %544 = vst [vmem:[#allocation3 + $0x30] sm:$0xff] %v542
        %v545 = vld [vmem:[#allocation2] sm:$0xff]
        %v546 = vld [vmem:[#allocation2 + $0x8] sm:$0xff]
        %549 = vrot.lane.b32.xlu0 %v545, 34
        %v550 = vpop.permute.xlu0 %549
        %551 = vrot.lane.b32.xlu0 %v546, 34
        %v552 = vpop.permute.xlu0 %551
        %vm553 = vcmask 277504
        %v554 = vsel %vm553, %v550, %v552
        %556 = vst [vmem:[#allocation3 + $0x38] sm:$0xff] %v554
        %v557 = vld [vmem:[#allocation2] sm:$0xff]
        %v558 = vld [vmem:[#allocation2 + $0x8] sm:$0xff]
        %561 = vrot.lane.b32.xlu0 %v557, 32
        %v562 = vpop.permute.xlu0 %561
        %563 = vrot.lane.b32.xlu0 %v558, 32
        %v564 = vpop.permute.xlu0 %563
        %vm565 = vcmask 261120
        %v566 = vsel %vm565, %v562, %v564
        %568 = vst [vmem:[#allocation3 + $0x40] sm:$0xff] %v566
        %v569 = vld [vmem:[#allocation2] sm:$0xff]
        %v570 = vld [vmem:[#allocation2 + $0x8] sm:$0xff]
        %573 = vrot.lane.b32.xlu0 %v569, 30
        %v574 = vpop.permute.xlu0 %573
        %575 = vrot.lane.b32.xlu0 %v570, 30
        %v576 = vpop.permute.xlu0 %575
        %vm577 = vcmask 244736
        %v578 = vsel %vm577, %v574, %v576
        %580 = vst [vmem:[#allocation3 + $0x48] sm:$0xff] %v578
        %v581 = vld [vmem:[#allocation2] sm:$0xff]
        %v582 = vld [vmem:[#allocation2 + $0x8] sm:$0xff]
        %585 = vrot.lane.b32.xlu0 %v581, 28
        %v586 = vpop.permute.xlu0 %585
        %587 = vrot.lane.b32.xlu0 %v582, 28
        %v588 = vpop.permute.xlu0 %587
        %vm589 = vcmask 228352
        %v590 = vsel %vm589, %v586, %v588
        %592 = vst [vmem:[#allocation3 + $0x50] sm:$0xff] %v590
        %v593 = vld [vmem:[#allocation2] sm:$0xff]
        %v594 = vld [vmem:[#allocation2 + $0x8] sm:$0xff]
        %597 = vrot.lane.b32.xlu0 %v593, 26
        %v598 = vpop.permute.xlu0 %597
        %599 = vrot.lane.b32.xlu0 %v594, 26
        %v600 = vpop.permute.xlu0 %599
        %vm601 = vcmask 211968
        %v602 = vsel %vm601, %v598, %v600
        %604 = vst [vmem:[#allocation3 + $0x58] sm:$0xff] %v602
        %v605 = vld [vmem:[#allocation2] sm:$0xff]
        %v606 = vld [vmem:[#allocation2 + $0x8] sm:$0xff]
        %609 = vrot.lane.b32.xlu0 %v605, 24
        %v610 = vpop.permute.xlu0 %609
        %611 = vrot.lane.b32.xlu0 %v606, 24
        %v612 = vpop.permute.xlu0 %611
        %vm613 = vcmask 195584
        %v614 = vsel %vm613, %v610, %v612
        %616 = vst [vmem:[#allocation3 + $0x60] sm:$0xff] %v614
        %v617 = vld [vmem:[#allocation2] sm:$0xff]
        %v618 = vld [vmem:[#allocation2 + $0x8] sm:$0xff]
        %621 = vrot.lane.b32.xlu0 %v617, 22
        %v622 = vpop.permute.xlu0 %621
        %623 = vrot.lane.b32.xlu0 %v618, 22
        %v624 = vpop.permute.xlu0 %623
        %vm625 = vcmask 179200
        %v626 = vsel %vm625, %v622, %v624
        %628 = vst [vmem:[#allocation3 + $0x68] sm:$0xff] %v626
        %v629 = vld [vmem:[#allocation2] sm:$0xff]
        %v630 = vld [vmem:[#allocation2 + $0x8] sm:$0xff]
        %633 = vrot.lane.b32.xlu0 %v629, 20
        %v634 = vpop.permute.xlu0 %633
        %635 = vrot.lane.b32.xlu0 %v630, 20
        %v636 = vpop.permute.xlu0 %635
        %vm637 = vcmask 162816
        %v638 = vsel %vm637, %v634, %v636
        %640 = vst [vmem:[#allocation3 + $0x70] sm:$0xff] %v638
        %v641 = vld [vmem:[#allocation2] sm:$0xff]
        %v642 = vld [vmem:[#allocation2 + $0x8] sm:$0xff]
        %645 = vrot.lane.b32.xlu0 %v641, 18
        %v646 = vpop.permute.xlu0 %645
        %647 = vrot.lane.b32.xlu0 %v642, 18
        %v648 = vpop.permute.xlu0 %647
        %vm649 = vcmask 146432
        %v650 = vsel %vm649, %v646, %v648
        %652 = vst [vmem:[#allocation3 + $0x78] sm:$0xff] %v650
        %v653 = vld [vmem:[#allocation2] sm:$0xff]
        %v654 = vld [vmem:[#allocation2 + $0x8] sm:$0xff]
        %657 = vrot.lane.b32.xlu0 %v653, 16
        %v658 = vpop.permute.xlu0 %657
        %659 = vrot.lane.b32.xlu0 %v654, 16
        %v660 = vpop.permute.xlu0 %659
        %vm661 = vcmask 130048
        %v662 = vsel %vm661, %v658, %v660
        %664 = vst [vmem:[#allocation3 + $0x80] sm:$0xff] %v662
        %v665 = vld [vmem:[#allocation2] sm:$0xff]
        %v666 = vld [vmem:[#allocation2 + $0x8] sm:$0xff]
        %669 = vrot.lane.b32.xlu0 %v665, 14
        %v670 = vpop.permute.xlu0 %669
        %671 = vrot.lane.b32.xlu0 %v666, 14
        %v672 = vpop.permute.xlu0 %671
        %vm673 = vcmask 113664
        %v674 = vsel %vm673, %v670, %v672
        %676 = vst [vmem:[#allocation3 + $0x88] sm:$0xff] %v674
        %v677 = vld [vmem:[#allocation2] sm:$0xff]
        %v678 = vld [vmem:[#allocation2 + $0x8] sm:$0xff]
        %681 = vrot.lane.b32.xlu0 %v677, 12
        %v682 = vpop.permute.xlu0 %681
        %683 = vrot.lane.b32.xlu0 %v678, 12
        %v684 = vpop.permute.xlu0 %683
        %vm685 = vcmask 97280
        %v686 = vsel %vm685, %v682, %v684
        %688 = vst [vmem:[#allocation3 + $0x90] sm:$0xff] %v686
        %v689 = vld [vmem:[#allocation2] sm:$0xff]
        %v690 = vld [vmem:[#allocation2 + $0x8] sm:$0xff]
        %693 = vrot.lane.b32.xlu0 %v689, 10
        %v694 = vpop.permute.xlu0 %693
        %695 = vrot.lane.b32.xlu0 %v690, 10
        %v696 = vpop.permute.xlu0 %695
        %vm697 = vcmask 80896
        %v698 = vsel %vm697, %v694, %v696
        %700 = vst [vmem:[#allocation3 + $0x98] sm:$0xff] %v698
        %v701 = vld [vmem:[#allocation2] sm:$0xff]
        %v702 = vld [vmem:[#allocation2 + $0x8] sm:$0xff]
        %705 = vrot.lane.b32.xlu0 %v701, 8
        %v706 = vpop.permute.xlu0 %705
        %707 = vrot.lane.b32.xlu0 %v702, 8
        %v708 = vpop.permute.xlu0 %707
        %vm709 = vcmask 64512
        %v710 = vsel %vm709, %v706, %v708
        %712 = vst [vmem:[#allocation3 + $0xa0] sm:$0xff] %v710
        %v713 = vld [vmem:[#allocation2] sm:$0xff]
        %v714 = vld [vmem:[#allocation2 + $0x8] sm:$0xff]
        %717 = vrot.lane.b32.xlu0 %v713, 6
        %v718 = vpop.permute.xlu0 %717
        %719 = vrot.lane.b32.xlu0 %v714, 6
        %v720 = vpop.permute.xlu0 %719
        %vm721 = vcmask 48128
        %v722 = vsel %vm721, %v718, %v720
        %724 = vst [vmem:[#allocation3 + $0xa8] sm:$0xff] %v722
        %v725 = vld [vmem:[#allocation2] sm:$0xff]
        %v726 = vld [vmem:[#allocation2 + $0x8] sm:$0xff]
        %729 = vrot.lane.b32.xlu0 %v725, 4
        %v730 = vpop.permute.xlu0 %729
        %731 = vrot.lane.b32.xlu0 %v726, 4
        %v732 = vpop.permute.xlu0 %731
        %vm733 = vcmask 31744
        %v734 = vsel %vm733, %v730, %v732
        %736 = vst [vmem:[#allocation3 + $0xb0] sm:$0xff] %v734
        %v737 = vld [vmem:[#allocation2] sm:$0xff]
        %v738 = vld [vmem:[#allocation2 + $0x8] sm:$0xff]
        %741 = vrot.lane.b32.xlu0 %v737, 2
        %v742 = vpop.permute.xlu0 %741
        %743 = vrot.lane.b32.xlu0 %v738, 2
        %v744 = vpop.permute.xlu0 %743
        %vm745 = vcmask 15360
        %v746 = vsel %vm745, %v742, %v744
        %748 = vst [vmem:[#allocation3 + $0xb8] sm:$0xff] %v746
        %v749 = vld [vmem:[#allocation2 + $0x8] sm:$0xff]
        %750 = vst [vmem:[#allocation3 + $0xc0] sm:$0xff] %v749
        %v751 = vld [vmem:[#allocation2 + $0x8] sm:$0xff]
        %v752 = vld [vmem:[#allocation2 + $0x10] sm:$0xff]
        %755 = vrot.lane.b32.xlu0 %v751, 126
        %v756 = vpop.permute.xlu0 %755
        %757 = vrot.lane.b32.xlu0 %v752, 126
        %v758 = vpop.permute.xlu0 %757
        %vm759 = vcmask 1031168
        %v760 = vsel %vm759, %v756, %v758
        %762 = vst [vmem:[#allocation3 + $0xc8] sm:$0xff] %v760
        %v763 = vld [vmem:[#allocation2 + $0x8] sm:$0xff]
        %v764 = vld [vmem:[#allocation2 + $0x10] sm:$0xff]
        %767 = vrot.lane.b32.xlu0 %v763, 124
        %v768 = vpop.permute.xlu0 %767
        %769 = vrot.lane.b32.xlu0 %v764, 124
        %v770 = vpop.permute.xlu0 %769
        %vm771 = vcmask 1014784
        %v772 = vsel %vm771, %v768, %v770
        %774 = vst [vmem:[#allocation3 + $0xd0] sm:$0xff] %v772
        %v775 = vld [vmem:[#allocation2 + $0x8] sm:$0xff]
        %v776 = vld [vmem:[#allocation2 + $0x10] sm:$0xff]
        %779 = vrot.lane.b32.xlu0 %v775, 122
        %v780 = vpop.permute.xlu0 %779
        %781 = vrot.lane.b32.xlu0 %v776, 122
        %v782 = vpop.permute.xlu0 %781
        %vm783 = vcmask 998400
        %v784 = vsel %vm783, %v780, %v782
        %786 = vst [vmem:[#allocation3 + $0xd8] sm:$0xff] %v784
        %v787 = vld [vmem:[#allocation2 + $0x8] sm:$0xff]
        %v788 = vld [vmem:[#allocation2 + $0x10] sm:$0xff]
        %791 = vrot.lane.b32.xlu0 %v787, 120
        %v792 = vpop.permute.xlu0 %791
        %793 = vrot.lane.b32.xlu0 %v788, 120
        %v794 = vpop.permute.xlu0 %793
        %vm795 = vcmask 982016
        %v796 = vsel %vm795, %v792, %v794
        %798 = vst [vmem:[#allocation3 + $0xe0] sm:$0xff] %v796
        %v799 = vld [vmem:[#allocation2 + $0x8] sm:$0xff]
        %v800 = vld [vmem:[#allocation2 + $0x10] sm:$0xff]
        %803 = vrot.lane.b32.xlu0 %v799, 118
        %v804 = vpop.permute.xlu0 %803
        %805 = vrot.lane.b32.xlu0 %v800, 118
        %v806 = vpop.permute.xlu0 %805
        %vm807 = vcmask 965632
        %v808 = vsel %vm807, %v804, %v806
        %810 = vst [vmem:[#allocation3 + $0xe8] sm:$0xff] %v808
        %v811 = vld [vmem:[#allocation2 + $0x8] sm:$0xff]
        %v812 = vld [vmem:[#allocation2 + $0x10] sm:$0xff]
        %815 = vrot.lane.b32.xlu0 %v811, 116
        %v816 = vpop.permute.xlu0 %815
        %817 = vrot.lane.b32.xlu0 %v812, 116
        %v818 = vpop.permute.xlu0 %817
        %vm819 = vcmask 949248
        %v820 = vsel %vm819, %v816, %v818
        %822 = vst [vmem:[#allocation3 + $0xf0] sm:$0xff] %v820
        %v823 = vld [vmem:[#allocation2 + $0x8] sm:$0xff]
        %v824 = vld [vmem:[#allocation2 + $0x10] sm:$0xff]
        %827 = vrot.lane.b32.xlu0 %v823, 114
        %v828 = vpop.permute.xlu0 %827
        %829 = vrot.lane.b32.xlu0 %v824, 114
        %v830 = vpop.permute.xlu0 %829
        %vm831 = vcmask 932864
        %v832 = vsel %vm831, %v828, %v830
        %834 = vst [vmem:[#allocation3 + $0xf8] sm:$0xff] %v832
        %v835 = vld [vmem:[#allocation2 + $0x8] sm:$0xff]
        %v836 = vld [vmem:[#allocation2 + $0x10] sm:$0xff]
        %839 = vrot.lane.b32.xlu0 %v835, 112
        %v840 = vpop.permute.xlu0 %839
        %841 = vrot.lane.b32.xlu0 %v836, 112
        %v842 = vpop.permute.xlu0 %841
        %vm843 = vcmask 916480
        %v844 = vsel %vm843, %v840, %v842
        %846 = vst [vmem:[#allocation3 + $0x100] sm:$0xff] %v844
        %v847 = vld [vmem:[#allocation2 + $0x8] sm:$0xff]
        %v848 = vld [vmem:[#allocation2 + $0x10] sm:$0xff]
        %851 = vrot.lane.b32.xlu0 %v847, 110
        %v852 = vpop.permute.xlu0 %851
        %853 = vrot.lane.b32.xlu0 %v848, 110
        %v854 = vpop.permute.xlu0 %853
        %vm855 = vcmask 900096
        %v856 = vsel %vm855, %v852, %v854
        %858 = vst [vmem:[#allocation3 + $0x108] sm:$0xff] %v856
        %v859 = vld [vmem:[#allocation2 + $0x8] sm:$0xff]
        %v860 = vld [vmem:[#allocation2 + $0x10] sm:$0xff]
        %863 = vrot.lane.b32.xlu0 %v859, 108
        %v864 = vpop.permute.xlu0 %863
        %865 = vrot.lane.b32.xlu0 %v860, 108
        %v866 = vpop.permute.xlu0 %865
        %vm867 = vcmask 883712
        %v868 = vsel %vm867, %v864, %v866
        %870 = vst [vmem:[#allocation3 + $0x110] sm:$0xff] %v868
        %v871 = vld [vmem:[#allocation2 + $0x8] sm:$0xff]
        %v872 = vld [vmem:[#allocation2 + $0x10] sm:$0xff]
        %875 = vrot.lane.b32.xlu0 %v871, 106
        %v876 = vpop.permute.xlu0 %875
        %877 = vrot.lane.b32.xlu0 %v872, 106
        %v878 = vpop.permute.xlu0 %877
        %vm879 = vcmask 867328
        %v880 = vsel %vm879, %v876, %v878
        %882 = vst [vmem:[#allocation3 + $0x118] sm:$0xff] %v880
        %v883 = vld [vmem:[#allocation2 + $0x8] sm:$0xff]
        %v884 = vld [vmem:[#allocation2 + $0x10] sm:$0xff]
        %887 = vrot.lane.b32.xlu0 %v883, 104
        %v888 = vpop.permute.xlu0 %887
        %889 = vrot.lane.b32.xlu0 %v884, 104
        %v890 = vpop.permute.xlu0 %889
        %vm891 = vcmask 850944
        %v892 = vsel %vm891, %v888, %v890
        %894 = vst [vmem:[#allocation3 + $0x120] sm:$0xff] %v892
        %v895 = vld [vmem:[#allocation2 + $0x8] sm:$0xff]
        %v896 = vld [vmem:[#allocation2 + $0x10] sm:$0xff]
        %899 = vrot.lane.b32.xlu0 %v895, 102
        %v900 = vpop.permute.xlu0 %899
        %901 = vrot.lane.b32.xlu0 %v896, 102
        %v902 = vpop.permute.xlu0 %901
        %vm903 = vcmask 834560
        %v904 = vsel %vm903, %v900, %v902
        %906 = vst [vmem:[#allocation3 + $0x128] sm:$0xff] %v904
        %v907 = vld [vmem:[#allocation2 + $0x8] sm:$0xff]
        %v908 = vld [vmem:[#allocation2 + $0x10] sm:$0xff]
        %911 = vrot.lane.b32.xlu0 %v907, 100
        %v912 = vpop.permute.xlu0 %911
        %913 = vrot.lane.b32.xlu0 %v908, 100
        %v914 = vpop.permute.xlu0 %913
        %vm915 = vcmask 818176
        %v916 = vsel %vm915, %v912, %v914
        %918 = vst [vmem:[#allocation3 + $0x130] sm:$0xff] %v916
        %v919 = vld [vmem:[#allocation2 + $0x8] sm:$0xff]
        %v920 = vld [vmem:[#allocation2 + $0x10] sm:$0xff]
        %923 = vrot.lane.b32.xlu0 %v919, 98
        %v924 = vpop.permute.xlu0 %923
        %925 = vrot.lane.b32.xlu0 %v920, 98
        %v926 = vpop.permute.xlu0 %925
        %vm927 = vcmask 801792
        %v928 = vsel %vm927, %v924, %v926
        %930 = vst [vmem:[#allocation3 + $0x138] sm:$0xff] %v928
        %v931 = vld [vmem:[#allocation2 + $0x8] sm:$0xff]
        %v932 = vld [vmem:[#allocation2 + $0x10] sm:$0xff]
        %935 = vrot.lane.b32.xlu0 %v931, 96
        %v936 = vpop.permute.xlu0 %935
        %937 = vrot.lane.b32.xlu0 %v932, 96
        %v938 = vpop.permute.xlu0 %937
        %vm939 = vcmask 785408
        %v940 = vsel %vm939, %v936, %v938
        %942 = vst [vmem:[#allocation3 + $0x140] sm:$0xff] %v940
        %v943 = vld [vmem:[#allocation2 + $0x8] sm:$0xff]
        %v944 = vld [vmem:[#allocation2 + $0x10] sm:$0xff]
        %947 = vrot.lane.b32.xlu0 %v943, 94
        %v948 = vpop.permute.xlu0 %947
        %949 = vrot.lane.b32.xlu0 %v944, 94
        %v950 = vpop.permute.xlu0 %949
        %vm951 = vcmask 769024
        %v952 = vsel %vm951, %v948, %v950
        %954 = vst [vmem:[#allocation3 + $0x148] sm:$0xff] %v952
        %v955 = vld [vmem:[#allocation2 + $0x8] sm:$0xff]
        %v956 = vld [vmem:[#allocation2 + $0x10] sm:$0xff]
        %959 = vrot.lane.b32.xlu0 %v955, 92
        %v960 = vpop.permute.xlu0 %959
        %961 = vrot.lane.b32.xlu0 %v956, 92
        %v962 = vpop.permute.xlu0 %961
        %vm963 = vcmask 752640
        %v964 = vsel %vm963, %v960, %v962
        %966 = vst [vmem:[#allocation3 + $0x150] sm:$0xff] %v964
        %v967 = vld [vmem:[#allocation2 + $0x8] sm:$0xff]
        %v968 = vld [vmem:[#allocation2 + $0x10] sm:$0xff]
        %971 = vrot.lane.b32.xlu0 %v967, 90
        %v972 = vpop.permute.xlu0 %971
        %973 = vrot.lane.b32.xlu0 %v968, 90
        %v974 = vpop.permute.xlu0 %973
        %vm975 = vcmask 736256
        %v976 = vsel %vm975, %v972, %v974
        %978 = vst [vmem:[#allocation3 + $0x158] sm:$0xff] %v976
        %v979 = vld [vmem:[#allocation2 + $0x8] sm:$0xff]
        %v980 = vld [vmem:[#allocation2 + $0x10] sm:$0xff]
        %983 = vrot.lane.b32.xlu0 %v979, 88
        %v984 = vpop.permute.xlu0 %983
        %985 = vrot.lane.b32.xlu0 %v980, 88
        %v986 = vpop.permute.xlu0 %985
        %vm987 = vcmask 719872
        %v988 = vsel %vm987, %v984, %v986
        %990 = vst [vmem:[#allocation3 + $0x160] sm:$0xff] %v988
        %v991 = vld [vmem:[#allocation2 + $0x8] sm:$0xff]
        %v992 = vld [vmem:[#allocation2 + $0x10] sm:$0xff]
        %995 = vrot.lane.b32.xlu0 %v991, 86
        %v996 = vpop.permute.xlu0 %995
        %997 = vrot.lane.b32.xlu0 %v992, 86
        %v998 = vpop.permute.xlu0 %997
        %vm999 = vcmask 703488
        %v1000 = vsel %vm999, %v996, %v998
        %1002 = vst [vmem:[#allocation3 + $0x168] sm:$0xff] %v1000
        %v1003 = vld [vmem:[#allocation2 + $0x8] sm:$0xff]
        %v1004 = vld [vmem:[#allocation2 + $0x10] sm:$0xff]
        %1007 = vrot.lane.b32.xlu0 %v1003, 84
        %v1008 = vpop.permute.xlu0 %1007
        %1009 = vrot.lane.b32.xlu0 %v1004, 84
        %v1010 = vpop.permute.xlu0 %1009
        %vm1011 = vcmask 687104
        %v1012 = vsel %vm1011, %v1008, %v1010
        %1014 = vst [vmem:[#allocation3 + $0x170] sm:$0xff] %v1012
        %v1015 = vld [vmem:[#allocation2 + $0x8] sm:$0xff]
        %v1016 = vld [vmem:[#allocation2 + $0x10] sm:$0xff]
        %1019 = vrot.lane.b32.xlu0 %v1015, 82
        %v1020 = vpop.permute.xlu0 %1019
        %1021 = vrot.lane.b32.xlu0 %v1016, 82
        %v1022 = vpop.permute.xlu0 %1021
        %vm1023 = vcmask 670720
        %v1024 = vsel %vm1023, %v1020, %v1022
        %1026 = vst [vmem:[#allocation3 + $0x178] sm:$0xff] %v1024
        %v1027 = vld [vmem:[#allocation2 + $0x8] sm:$0xff]
        %v1028 = vld [vmem:[#allocation2 + $0x10] sm:$0xff]
        %1031 = vrot.lane.b32.xlu0 %v1027, 80
        %v1032 = vpop.permute.xlu0 %1031
        %1033 = vrot.lane.b32.xlu0 %v1028, 80
        %v1034 = vpop.permute.xlu0 %1033
        %vm1035 = vcmask 654336
        %v1036 = vsel %vm1035, %v1032, %v1034
        %1038 = vst [vmem:[#allocation3 + $0x180] sm:$0xff] %v1036
        %v1039 = vld [vmem:[%s3] sm:$0xff]
        %v1040 = vld [vmem:[%s3 + $0x8] sm:$0xff]
        %v1041 = vld [vmem:[%s3 + $0x10] sm:$0xff]
        %v1042 = vld [vmem:[%s3 + $0x18] sm:$0xf]
        %v1043 = vld [vmem:[%s3 + $0x1c] sm:$0xff]
        %v1044 = vld [vmem:[%s3 + $0x24] sm:$0xff]
        %v1045 = vld [vmem:[%s3 + $0x2c] sm:$0xff]
        %v1046 = vld [vmem:[%s3 + $0x34] sm:$0xf]
        %v1047 = vld [vmem:[#allocation3] sm:$0xff]
        %v1048 = vld [vmem:[#allocation3 + $0x8] sm:$0xff]
        %v1049 = vld [vmem:[#allocation3 + $0x10] sm:$0xff]
        %v1050 = vld [vmem:[#allocation3 + $0x18] sm:$0xff]
        %v1051 = vld [vmem:[#allocation3 + $0x20] sm:$0xff]
        %v1052 = vld [vmem:[#allocation3 + $0x28] sm:$0xff]
        %v1053 = vld [vmem:[#allocation3 + $0x30] sm:$0xff]
        %v1054 = vld [vmem:[#allocation3 + $0x38] sm:$0xff]
        %v1055 = vld [vmem:[#allocation3 + $0x40] sm:$0xff]
        %v1056 = vld [vmem:[#allocation3 + $0x48] sm:$0xff]
        %v1057 = vld [vmem:[#allocation3 + $0x50] sm:$0xff]
        %v1058 = vld [vmem:[#allocation3 + $0x58] sm:$0xff]
        %v1059 = vld [vmem:[#allocation3 + $0x60] sm:$0xff]
        %v1060 = vld [vmem:[#allocation3 + $0x68] sm:$0xff]
        %v1061 = vld [vmem:[#allocation3 + $0x70] sm:$0xff]
        %v1062 = vld [vmem:[#allocation3 + $0x78] sm:$0xff]
        %v1063 = vld [vmem:[#allocation3 + $0x80] sm:$0xff]
        %v1064 = vld [vmem:[#allocation3 + $0x88] sm:$0xff]
        %v1065 = vld [vmem:[#allocation3 + $0x90] sm:$0xff]
        %v1066 = vld [vmem:[#allocation3 + $0x98] sm:$0xff]
        %v1067 = vld [vmem:[#allocation3 + $0xa0] sm:$0xff]
        %v1068 = vld [vmem:[#allocation3 + $0xa8] sm:$0xff]
        %v1069 = vld [vmem:[#allocation3 + $0xb0] sm:$0xff]
        %v1070 = vld [vmem:[#allocation3 + $0xb8] sm:$0xff]
        %v1071 = vld [vmem:[#allocation3 + $0xc0] sm:$0xff]
        %v1072 = vld [vmem:[#allocation3 + $0xc8] sm:$0xff]
        %v1073 = vld [vmem:[#allocation3 + $0xd0] sm:$0xff]
        %v1074 = vld [vmem:[#allocation3 + $0xd8] sm:$0xff]
        %v1075 = vld [vmem:[#allocation3 + $0xe0] sm:$0xff]
        %v1076 = vld [vmem:[#allocation3 + $0xe8] sm:$0xff]
        %v1077 = vld [vmem:[#allocation3 + $0xf0] sm:$0xff]
        %v1078 = vld [vmem:[#allocation3 + $0xf8] sm:$0xff]
        %v1079 = vld [vmem:[#allocation3 + $0x100] sm:$0xff]
        %v1080 = vld [vmem:[#allocation3 + $0x108] sm:$0xff]
        %v1081 = vld [vmem:[#allocation3 + $0x110] sm:$0xff]
        %v1082 = vld [vmem:[#allocation3 + $0x118] sm:$0xff]
        %v1083 = vld [vmem:[#allocation3 + $0x120] sm:$0xff]
        %v1084 = vld [vmem:[#allocation3 + $0x128] sm:$0xff]
        %v1085 = vld [vmem:[#allocation3 + $0x130] sm:$0xff]
        %v1086 = vld [vmem:[#allocation3 + $0x138] sm:$0xff]
        %v1087 = vld [vmem:[#allocation3 + $0x140] sm:$0xff]
        %v1088 = vld [vmem:[#allocation3 + $0x148] sm:$0xff]
        %v1089 = vld [vmem:[#allocation3 + $0x150] sm:$0xff]
        %v1090 = vld [vmem:[#allocation3 + $0x158] sm:$0xff]
        %v1091 = vld [vmem:[#allocation3 + $0x160] sm:$0xff]
        %v1092 = vld [vmem:[#allocation3 + $0x168] sm:$0xff]
        %v1093 = vld [vmem:[#allocation3 + $0x170] sm:$0xff]
        %v1094 = vld [vmem:[#allocation3 + $0x178] sm:$0xff]
        %v1095 = vld [vmem:[#allocation3 + $0x180] sm:$0xff]
        %v1096 = vld [vmem:[%s4] sm:$0xff]
        %v1097 = vld [vmem:[%s4 + $0x8] sm:$0xff]
        %1099 = vset.pattern.permute.xlu0 0
        %1100 = vperm.xlu0 %1099, %v1096
        %v1101 = vpop.permute.xlu0 %1100
        %1104 = vset.pattern.permute.xlu0 0
        %1105 = vperm.xlu0 %1104, %v1097
        %v1106 = vpop.permute.xlu0 %1105
        %v1116 = vunpack.c.l.b16 %v1039
        %v1117 = vunpack.c.h.b16 %v1039
        %v1118 = vunpack.c.l.b16 %v1040
        %v1119 = vunpack.c.h.b16 %v1040
        %v1120 = vunpack.c.l.b16 %v1041
        %v1121 = vunpack.c.h.b16 %v1041
        %v1122 = vunpack.c.l.b16 %v1042
        %v1123 = vunpack.c.l.b16 %v1043
        %v1124 = vunpack.c.h.b16 %v1043
        %v1125 = vunpack.c.l.b16 %v1044
        %v1126 = vunpack.c.h.b16 %v1044
        %v1127 = vunpack.c.l.b16 %v1045
        %v1128 = vunpack.c.h.b16 %v1045
        %v1129 = vunpack.c.l.b16 %v1046
        %v1130 = vpack.c.b16 %v1123, %v1116
        %v1131 = vpack.c.b16 %v1124, %v1117
        %v1132 = vpack.c.b16 %v1125, %v1118
        %v1133 = vpack.c.b16 %v1126, %v1119
        %v1134 = vpack.c.b16 %v1127, %v1120
        %v1135 = vpack.c.b16 %v1128, %v1121
        %v1136 = vpack.c.b16 %v1129, %v1122
        %vm1143 = vcmask 130048
        %v1145 = vsel %vm1143, %v1136, 0
        %1147 = vmatprep.subr.bf16.mxu0 0
        %1148 = vmatpush1.bf16.msra.mxu0 %v1047
        %1149 = vmatprep.subr.bf16.mxu0 0
        %1150 = vmatpush1.bf16.msra.mxu0 %v1048
        %1151 = vmatprep.subr.bf16.mxu0 0
        %1152 = vmatpush1.bf16.msra.mxu0 %v1049
        %1153 = vmatprep.subr.bf16.mxu0 0
        %1154 = vmatpush1.bf16.msra.mxu0 %v1050
        %1155 = vmatprep.subr.bf16.mxu0 0
        %1156 = vmatpush1.bf16.msra.mxu0 %v1051
        %1157 = vmatprep.subr.bf16.mxu0 0
        %1158 = vmatpush1.bf16.msra.mxu0 %v1052
        %1159 = vmatprep.subr.bf16.mxu0 0
        %1160 = vmatpush1.bf16.msra.mxu0 %v1053
        %1161 = vmatprep.subr.bf16.mxu0 0
        %1162 = vmatpush1.bf16.msra.mxu0 %v1054
        %1163 = vmatprep.subr.bf16.mxu0 0
        %1164 = vmatpush1.bf16.msra.mxu0 %v1055
        %1165 = vmatprep.subr.bf16.mxu0 0
        %1166 = vmatpush1.bf16.msra.mxu0 %v1056
        %1167 = vmatprep.subr.bf16.mxu0 0
        %1168 = vmatpush1.bf16.msra.mxu0 %v1057
        %1169 = vmatprep.subr.bf16.mxu0 0
        %1170 = vmatpush1.bf16.msra.mxu0 %v1058
        %1171 = vmatprep.subr.bf16.mxu0 0
        %1172 = vmatpush1.bf16.msra.mxu0 %v1059
        %1173 = vmatprep.subr.bf16.mxu0 0
        %1174 = vmatpush1.bf16.msra.mxu0 %v1060
        %1175 = vmatprep.subr.bf16.mxu0 0
        %1176 = vmatpush1.bf16.msra.mxu0 %v1061
        %1177 = vmatprep.subr.bf16.mxu0 0
        %1178 = vmatpush1.bf16.msra.mxu0 %v1062
        %1179 = vmatprep.mubr.bf16.mxu0 %v1131
        %1180 = vmatmul.mubr.bf16.gmra.mrb[0].mxu0 %v1130
        %v1181 = vpop.f32.mrb[0].mxu0
        %v1182 = vadd.f32 %v1101, %v1181
        %v1183 = vpop.f32.mrb[0].mxu0
        %v1184 = vpop.f32.mrb[0].mxu0
        %v1185 = vadd.f32 %v1106, %v1184
        %v1186 = vpop.f32.mrb[0].mxu0
        %1187 = vdwg.mxu0
        %1188 = vmatprep.subr.bf16.mxu0 0
        %1189 = vmatpush1.bf16.msra.mxu0 %v1063
        %1190 = vmatprep.subr.bf16.mxu0 0
        %1191 = vmatpush1.bf16.msra.mxu0 %v1064
        %1192 = vmatprep.subr.bf16.mxu0 0
        %1193 = vmatpush1.bf16.msra.mxu0 %v1065
        %1194 = vmatprep.subr.bf16.mxu0 0
        %1195 = vmatpush1.bf16.msra.mxu0 %v1066
        %1196 = vmatprep.subr.bf16.mxu0 0
        %1197 = vmatpush1.bf16.msra.mxu0 %v1067
        %1198 = vmatprep.subr.bf16.mxu0 0
        %1199 = vmatpush1.bf16.msra.mxu0 %v1068
        %1200 = vmatprep.subr.bf16.mxu0 0
        %1201 = vmatpush1.bf16.msra.mxu0 %v1069
        %1202 = vmatprep.subr.bf16.mxu0 0
        %1203 = vmatpush1.bf16.msra.mxu0 %v1070
        %1204 = vmatprep.subr.bf16.mxu0 0
        %1205 = vmatpush1.bf16.msra.mxu0 %v1071
        %1206 = vmatprep.subr.bf16.mxu0 0
        %1207 = vmatpush1.bf16.msra.mxu0 %v1072
        %1208 = vmatprep.subr.bf16.mxu0 0
        %1209 = vmatpush1.bf16.msra.mxu0 %v1073
        %1210 = vmatprep.subr.bf16.mxu0 0
        %1211 = vmatpush1.bf16.msra.mxu0 %v1074
        %1212 = vmatprep.subr.bf16.mxu0 0
        %1213 = vmatpush1.bf16.msra.mxu0 %v1075
        %1214 = vmatprep.subr.bf16.mxu0 0
        %1215 = vmatpush1.bf16.msra.mxu0 %v1076
        %1216 = vmatprep.subr.bf16.mxu0 0
        %1217 = vmatpush1.bf16.msra.mxu0 %v1077
        %1218 = vmatprep.subr.bf16.mxu0 0
        %1219 = vmatpush1.bf16.msra.mxu0 %v1078
        %1220 = vmatprep.mubr.bf16.mxu0 %v1133
        %1221 = vmatmul.mubr.bf16.gmra.mrb[0].mxu0 %v1132
        %v1222 = vpop.f32.mrb[0].mxu0
        %v1223 = vadd.f32 %v1182, %v1222
        %v1224 = vpop.f32.mrb[0].mxu0
        %v1225 = vpop.f32.mrb[0].mxu0
        %v1226 = vadd.f32 %v1185, %v1225
        %v1227 = vpop.f32.mrb[0].mxu0
        %1228 = vdwg.mxu0
        %1229 = vmatprep.subr.bf16.mxu0 0
        %1230 = vmatpush1.bf16.msra.mxu0 %v1079
        %1231 = vmatprep.subr.bf16.mxu0 0
        %1232 = vmatpush1.bf16.msra.mxu0 %v1080
        %1233 = vmatprep.subr.bf16.mxu0 0
        %1234 = vmatpush1.bf16.msra.mxu0 %v1081
        %1235 = vmatprep.subr.bf16.mxu0 0
        %1236 = vmatpush1.bf16.msra.mxu0 %v1082
        %1237 = vmatprep.subr.bf16.mxu0 0
        %1238 = vmatpush1.bf16.msra.mxu0 %v1083
        %1239 = vmatprep.subr.bf16.mxu0 0
        %1240 = vmatpush1.bf16.msra.mxu0 %v1084
        %1241 = vmatprep.subr.bf16.mxu0 0
        %1242 = vmatpush1.bf16.msra.mxu0 %v1085
        %1243 = vmatprep.subr.bf16.mxu0 0
        %1244 = vmatpush1.bf16.msra.mxu0 %v1086
        %1245 = vmatprep.subr.bf16.mxu0 0
        %1246 = vmatpush1.bf16.msra.mxu0 %v1087
        %1247 = vmatprep.subr.bf16.mxu0 0
        %1248 = vmatpush1.bf16.msra.mxu0 %v1088
        %1249 = vmatprep.subr.bf16.mxu0 0
        %1250 = vmatpush1.bf16.msra.mxu0 %v1089
        %1251 = vmatprep.subr.bf16.mxu0 0
        %1252 = vmatpush1.bf16.msra.mxu0 %v1090
        %1253 = vmatprep.subr.bf16.mxu0 0
        %1254 = vmatpush1.bf16.msra.mxu0 %v1091
        %1255 = vmatprep.subr.bf16.mxu0 0
        %1256 = vmatpush1.bf16.msra.mxu0 %v1092
        %1257 = vmatprep.subr.bf16.mxu0 0
        %1258 = vmatpush1.bf16.msra.mxu0 %v1093
        %1259 = vmatprep.subr.bf16.mxu0 0
        %1260 = vmatpush1.bf16.msra.mxu0 %v1094
        %1261 = vmatprep.mubr.bf16.mxu0 %v1135
        %1262 = vmatmul.mubr.bf16.gmra.mrb[0].mxu0 %v1134
        %v1263 = vpop.f32.mrb[0].mxu0
        %v1264 = vadd.f32 %v1223, %v1263
        %v1265 = vpop.f32.mrb[0].mxu0
        %v1266 = vpop.f32.mrb[0].mxu0
        %v1267 = vadd.f32 %v1226, %v1266
        %v1268 = vpop.f32.mrb[0].mxu0
        %1269 = vdwg.mxu0
        %1270 = vmatprep.subr.bf16.mxu0 0
        %1271 = vmatpush1.bf16.msra.mxu0 %v1095
        %1272 = vmatprep.subr.bf16.mxu0 0
        %1273 = vmatpush1.bf16.msra.mxu0 0
        %1274 = vmatprep.subr.bf16.mxu0 0
        %1275 = vmatpush1.bf16.msra.mxu0 0
        %1276 = vmatprep.subr.bf16.mxu0 0
        %1277 = vmatpush1.bf16.msra.mxu0 0
        %1278 = vmatprep.subr.bf16.mxu0 0
        %1279 = vmatpush1.bf16.msra.mxu0 0
        %1280 = vmatprep.subr.bf16.mxu0 0
        %1281 = vmatpush1.bf16.msra.mxu0 0
        %1282 = vmatprep.subr.bf16.mxu0 0
        %1283 = vmatpush1.bf16.msra.mxu0 0
        %1284 = vmatprep.subr.bf16.mxu0 0
        %1285 = vmatpush1.bf16.msra.mxu0 0
        %1286 = vmatprep.subr.bf16.mxu0 0
        %1287 = vmatpush1.bf16.msra.mxu0 0
        %1288 = vmatprep.subr.bf16.mxu0 0
        %1289 = vmatpush1.bf16.msra.mxu0 0
        %1290 = vmatprep.subr.bf16.mxu0 0
        %1291 = vmatpush1.bf16.msra.mxu0 0
        %1292 = vmatprep.subr.bf16.mxu0 0
        %1293 = vmatpush1.bf16.msra.mxu0 0
        %1294 = vmatprep.subr.bf16.mxu0 0
        %1295 = vmatpush1.bf16.msra.mxu0 0
        %1296 = vmatprep.subr.bf16.mxu0 0
        %1297 = vmatpush1.bf16.msra.mxu0 0
        %1298 = vmatprep.subr.bf16.mxu0 0
        %1299 = vmatpush1.bf16.msra.mxu0 0
        %1300 = vmatprep.subr.bf16.mxu0 0
        %1301 = vmatpush1.bf16.msra.mxu0 0
        %1302 = vmatprep.mubr.bf16.mxu0 0
        %1303 = vmatmul.mubr.bf16.gmra.mrb[0].mxu0 %v1145
        %v1304 = vpop.f32.mrb[0].mxu0
        %v1305 = vadd.f32 %v1264, %v1304
        %v1306 = vpop.f32.mrb[0].mxu0
        %v1307 = vpop.f32.mrb[0].mxu0
        %v1308 = vadd.f32 %v1267, %v1307
        %v1309 = vpop.f32.mrb[0].mxu0
        %1310 = vdwg.mxu0
        %1311 = vst [vmem:[%s420] sm:$0xff] %v1305
        %1312 = vst [vmem:[%s420 + $0x8] sm:$0xff] %v1308
        %s1313 = sand.u32 %s179, 1
        %s1314 = scalar_lea.sflag [#allocation8], %s1313
        %s1315 = sand.u32 %s179, 1
        %s1316 = smul.addr %s1315, 16
        %s1317 = scalar_lea.vmem [#allocation7], %s1316
        // Predicated region
        $region171: #{bicnn_forward.1} parent=141 // pred_check
          %p1318 = pneg %p189
        $region172: #{bicnn_forward.1} parent=141 // pred_check_branch
          %1320 = sbr.rel (%p1318) target = $region174
        $region173: #{bicnn_forward.1} parent=141 // pred_region
          %s1322 = ssub.s32 256, 256
          %1323 = vsyncadd %s1314, %s1322
          %s1324 = smul.addr %s23, 4
          %s1325 = sadd.s32 %s24, %s1324
          %s1326 = smul.addr %s1325, 128
          %s1327 = scalar_lea.hbm %s5, %s1326
          %s1328 = sshll.u32 %s1317, 4
          %s1329 = int_to_ptr.vmem [resolvable:$true] %s1328
          %1334 = dma.vmem_to_hbm [thread:$0]  %s1329, 256, %s1327, %s1314, 128, 256, 8
        $region174: #{bicnn_forward.1} parent=141 // pred_fallthru
          _
      $region142: #{bicnn_forward.1} parent=5 // pred_fallthru
        _
      %p1335 = scmp.le.s32.totalorder 2, %s14
      // Predicated region
      $region175: #{bicnn_forward.1} parent=5 // pred_check
        %p1336 = pneg %p1335
      $region176: #{bicnn_forward.1} parent=5 // pred_check_branch
        %1338 = sbr.rel (%p1336) target = $region178
      $region177: #{bicnn_forward.1} parent=5 // pred_region
        %s1339 = ssub.s32 %s14, 2
        // Predicated region
        $region179: #{bicnn_forward.1} parent=177 // pred_check
          %p1340 = pneg %p195
        $region180: #{bicnn_forward.1} parent=177 // pred_check_branch
          %1342 = sbr.rel (%p1340) target = $region182
        $region181: #{bicnn_forward.1} parent=177 // pred_region
          %s1343 = sand.u32 %s180, 1
          %s1344 = scalar_lea.sflag [#allocation8], %s1343
          %s1345 = sand.u32 %s180, 1
          %s1346 = smul.addr %s1345, 16
          %s1347 = scalar_lea.vmem [#allocation7], %s1346
          %1348 = dma.done %s1344, 256
        $region182: #{bicnn_forward.1} parent=177 // pred_fallthru
          _
      $region178: #{bicnn_forward.1} parent=5 // pred_fallthru
        _
    $region6: #{bicnn_forward.1} parent=1 // loop_footer
      %s18 = sadd.s32 1, %s14
    $region7: #{bicnn_forward.1} parent=1 // loop_footer_branch
      %13 = sbr.rel target = $region3
    $region8: #{bicnn_forward.1} parent=1 // loop_exit
      _
    %1349 = vsyncpa [#allocation8], 1
    %s1350 = scalar_lea.sflag [#allocation8], 1
    %1351 = vsyncpa %s1350, 1

</llo_original>
